<compile_context>
chip_gen: v5e
topology: v5e:2x2
jax: 0.10.0
libtpu: 0.0.40
codegen_flags: <defaults>
</compile_context>

<pallas_src>
import math

import jax
import jax.numpy as jnp
from jax.experimental import pallas as pl
from jax.experimental.pallas import tpu as pltpu


def _round_up(x, m):
    return (x + m - 1) // m * m


# --------------------------- Fused model kernel ------------------------------

def make_gru_model_kernel(num_layers, T, Bp, D, H, O):
    """Kernel computing all GRU layers + final FC in one invocation.

    Ref layout (positional):
      x_flat(T*Bp, D),
      per layer: w_ih (Din, 3H), w_hh (H, 3H), bias (2, 3H)    [3 refs / layer]
                 bias row 0 = [b_ir+b_hr, b_iz+b_hz, b_in]
                 bias row 1 = [0, 0, b_hn]
      w_fc (H, O), b_fc (1, O),
      out (Bp, O),
      scratch: gi (T*Bp, 3H), seq (T*Bp, H)     (both VMEM)
    """
    H2, H3 = 2 * H, 3 * H

    def kernel(*refs):
        x_ref = refs[0]
        idx = 1
        layer_refs = []
        for _ in range(num_layers):
            layer_refs.append(refs[idx:idx + 3])
            idx += 3
        w_fc_ref, b_fc_ref = refs[idx], refs[idx + 1]
        out_ref = refs[idx + 2]
        gi_ref, seq_ref = refs[idx + 3], refs[idx + 4]

        h_last = None
        for li in range(num_layers):
            w_ih_ref, w_hh_ref, b_ref = layer_refs[li]
            bias = b_ref[...]                       # (2, 3H)
            b3 = bias[0:1, :]                       # (1, 3H) added into gi
            bhn = bias[1:2, H2:H3]                  # (1, H)  stays in recurrence

            # ---- hoisted, time-parallel input projection: ONE fused matmul
            x_flat = x_ref[...] if li == 0 else seq_ref[...]      # (T*Bp, Din)
            gi_ref[...] = jnp.dot(x_flat, w_ih_ref[...],
                                  preferred_element_type=jnp.float32) + b3

            Whh = w_hh_ref[...]                     # (H, 3H) fused gate weights
            last_layer = (li == num_layers - 1)

            # ---- t = 0 peeled: h == 0 -> recurrent matmul result is 0
            gi0 = gi_ref[pl.ds(0, Bp), :]                         # (Bp, 3H)
            r0 = jax.nn.sigmoid(gi0[:, 0:H])
            z0 = jax.nn.sigmoid(gi0[:, H:H2])
            n0 = jnp.tanh(gi0[:, H2:H3] + r0 * bhn)
            h = n0 - z0 * n0                                      # (1-z0)*n0
            if not last_layer:
                seq_ref[pl.ds(0, Bp), :] = h

            # ---- serial time recurrence (static unroll; T is tiny)
            for t in range(1, T):
                sl = pl.ds(t * Bp, Bp)                            # 8-aligned slice
                gh = jnp.dot(h, Whh, preferred_element_type=jnp.float32)  # (Bp,3H)
                gi_t = gi_ref[sl, :]                              # (Bp, 3H)
                r = jax.nn.sigmoid(gi_t[:, 0:H] + gh[:, 0:H])
                z = jax.nn.sigmoid(gi_t[:, H:H2] + gh[:, H:H2])
                n = jnp.tanh(gi_t[:, H2:H3] + r * (gh[:, H2:H3] + bhn))
                h = n + z * (h - n)                               # == (1-z)*n + z*h
                if not last_layer:
                    seq_ref[sl, :] = h                            # next layer input
            h_last = h

        # Final Linear on the last timestep's hidden state (fused; O is tiny).
        out_ref[...] = jnp.dot(h_last, w_fc_ref[...],
                               preferred_element_type=jnp.float32) + b_fc_ref[...]

    return kernel


# ------------------------------ Model wrapper --------------------------------

def gru_model_forward(x, params):
    """x: (B, T, input_size), batch_first like the PyTorch module."""
    B, T, D = x.shape
    layers = params["gru_layers"]
    L = len(layers)
    H = layers[0]["w_hh"].shape[0]
    O = params["w_fc_T"].shape[1]
    Bp = _round_up(B, 8)                      # sublane-align the batch

    # batch_first -> time-major, pad batch, flatten to (T*Bp, D)
    x_tm = jnp.transpose(x.astype(jnp.float32), (1, 0, 2))        # (T, B, D)
    x_tm = jnp.pad(x_tm, ((0, 0), (0, Bp - B), (0, 0)))
    x_flat = x_tm.reshape(T * Bp, D)

    args = [x_flat]
    for lp in layers:
        args += [lp["w_ih"], lp["w_hh"], lp["bias"]]
    args += [params["w_fc_T"], params["b_fc"].reshape(1, -1)]
    n_in = len(args)

    kernel = make_gru_model_kernel(L, T, Bp, D, H, O)
    out = pl.pallas_call(
        kernel,
        out_shape=jax.ShapeDtypeStruct((Bp, O), jnp.float32),
        in_specs=[pl.BlockSpec(memory_space=pltpu.MemorySpace.VMEM)] * n_in,
        out_specs=pl.BlockSpec(memory_space=pltpu.MemorySpace.VMEM),
        scratch_shapes=[
            pltpu.VMEM((T * Bp, 3 * H), jnp.float32),  # gi: fused input projection
            pltpu.VMEM((T * Bp, H), jnp.float32),      # layer output sequence
        ],
    )(*args)
    return out[:B]


# ---------------------------- Pure-JAX reference -----------------------------

def gru_model_ref(x, params):
    """Same math as torch.nn.GRU (eval mode) + Linear, run in plain JAX."""
    hi = jax.lax.Precision.HIGHEST
    h_seq = jnp.transpose(x.astype(jnp.float32), (1, 0, 2))       # (T, B, D)
    for lp in params["gru_layers"]:
        w_ih, w_hh, bias = lp["w_ih"], lp["w_hh"], lp["bias"]
        H = w_hh.shape[0]
        H2, H3 = 2 * H, 3 * H
        b3 = bias[0]
        bhn = bias[1, H2:H3]
        T, B, _ = h_seq.shape
        h = jnp.zeros((B, H), jnp.float32)
        outs = []
        for t in range(T):
            gi = jnp.dot(h_seq[t], w_ih, precision=hi) + b3
            gh = jnp.dot(h, w_hh, precision=hi)
            r = jax.nn.sigmoid(gi[:, 0:H] + gh[:, 0:H])
            z = jax.nn.sigmoid(gi[:, H:H2] + gh[:, H:H2])
            n = jnp.tanh(gi[:, H2:H3] + r * (gh[:, H2:H3] + bhn))
            h = (1.0 - z) * n + z * h
            outs.append(h)
        h_seq = jnp.stack(outs)
    return jnp.dot(h_seq[-1], params["w_fc_T"], precision=hi) + params["b_fc"]


# ----------------------------- Parameter init --------------------------------

def init_params(key, input_size, hidden_size, num_layers, output_size):
    """Gate-fused transposed weights; r/z biases pre-combined (b_ih + b_hh)."""
    params = {"gru_layers": []}
    H = hidden_size
    k = 1.0 / math.sqrt(H)

    def u(kk, shape):
        return jax.random.uniform(kk, shape, jnp.float32, -k, k)

    for layer in range(num_layers):
        d_in = input_size if layer == 0 else H
        key, *ks = jax.random.split(key, 13)
        w_ih = jnp.concatenate(
            [u(ks[0], (d_in, H)), u(ks[1], (d_in, H)), u(ks[2], (d_in, H))], axis=1)
        w_hh = jnp.concatenate(
            [u(ks[3], (H, H)), u(ks[4], (H, H)), u(ks[5], (H, H))], axis=1)
        b_r = u(ks[6], (H,)) + u(ks[7], (H,))     # b_ir + b_hr
        b_z = u(ks[8], (H,)) + u(ks[9], (H,))     # b_iz + b_hz
        b_in = u(ks[10], (H,))
        b_hn = u(ks[11], (H,))
        bias = jnp.zeros((2, 3 * H), jnp.float32)
        bias = bias.at[0, 0:H].set(b_r)
        bias = bias.at[0, H:2 * H].set(b_z)
        bias = bias.at[0, 2 * H:3 * H].set(b_in)
        bias = bias.at[1, 2 * H:3 * H].set(b_hn)
        params["gru_layers"].append({"w_ih": w_ih, "w_hh": w_hh, "bias": bias})

    key, k1, k2 = jax.random.split(key, 3)
    params["w_fc_T"] = u(k1, (H, output_size))
    params["b_fc"] = u(k2, (output_size,))
    return params


# ----------------------------------- Main -------------------------------------

if __name__ == "__main__":
    B, T = 2, 8
    INPUT_SIZE, HIDDEN_SIZE, NUM_LAYERS, OUTPUT_SIZE = 16, 32, 2, 4

    key = jax.random.PRNGKey(0)
    key, kx = jax.random.split(key)
    x = jax.random.normal(kx, (B, T, INPUT_SIZE), jnp.float32)

    params = init_params(key, INPUT_SIZE, HIDDEN_SIZE, NUM_LAYERS, OUTPUT_SIZE)

    out = jax.block_until_ready(gru_model_forward(x, params))
    ref = gru_model_ref(x, params)

    assert out.shape == (B, OUTPUT_SIZE), out.shape
    # Tolerance allows for the MXU's f32 multi-pass matmul vs. the XLA
    # highest-precision reference path; real bugs produce O(0.1+) errors.
    assert jnp.allclose(out, ref, atol=5e-3, rtol=5e-3), (
        f"max abs diff = {float(jnp.max(jnp.abs(out - ref)))}")

    print("KERNEL_OK")
</pallas_src>

<mosaic_0001>
module attributes {stable_mosaic.version = 11 : i64} {
  func.func @kernel(%arg0: memref<64x16xf32, #tpu.memory_space<vmem>>, %arg1: memref<16x96xf32, #tpu.memory_space<vmem>>, %arg2: memref<32x96xf32, #tpu.memory_space<vmem>>, %arg3: memref<2x96xf32, #tpu.memory_space<vmem>>, %arg4: memref<32x96xf32, #tpu.memory_space<vmem>>, %arg5: memref<32x96xf32, #tpu.memory_space<vmem>>, %arg6: memref<2x96xf32, #tpu.memory_space<vmem>>, %arg7: memref<32x4xf32, #tpu.memory_space<vmem>>, %arg8: memref<1x4xf32, #tpu.memory_space<vmem>>, %arg9: memref<8x4xf32, #tpu.memory_space<vmem>>, %arg10: memref<64x96xf32, #tpu.memory_space<vmem>>, %arg11: memref<64x32xf32, #tpu.memory_space<vmem>>) attributes {dimension_semantics = [], scalar_prefetch = 0 : i64, scratch_operands = 2 : i64, tpu.core_type = #tpu.core_type<tc>} {
    %c0 = arith.constant 0 : index
    %c0_0 = arith.constant 0 : index
    %0 = vector.load %arg3[%c0, %c0_0] : memref<2x96xf32, #tpu.memory_space<vmem>>, vector<2x96xf32>
    %1 = vector.extract_strided_slice %0 {offsets = [0, 0], sizes = [1, 96], strides = [1, 1]} : vector<2x96xf32> to vector<1x96xf32>
    %2 = vector.extract_strided_slice %0 {offsets = [1, 64], sizes = [1, 32], strides = [1, 1]} : vector<2x96xf32> to vector<1x32xf32>
    %c0_1 = arith.constant 0 : index
    %c0_2 = arith.constant 0 : index
    %3 = vector.load %arg0[%c0_1, %c0_2] : memref<64x16xf32, #tpu.memory_space<vmem>>, vector<64x16xf32>
    %c0_3 = arith.constant 0 : index
    %c0_4 = arith.constant 0 : index
    %4 = vector.load %arg1[%c0_3, %c0_4] : memref<16x96xf32, #tpu.memory_space<vmem>>, vector<16x96xf32>
    %cst = arith.constant dense<0.000000e+00> : vector<64x96xf32>
    %5 = tpu.matmul %3, %4, %cst {dimension_numbers = #tpu.dot_dimension_numbers<[1], [0], [0], [1], [0, 0, 1, 1], [], []>} : vector<64x16xf32>, vector<16x96xf32>, vector<64x96xf32> -> vector<64x96xf32>
    %6 = vector.broadcast %1 : vector<1x96xf32> to vector<64x96xf32>
    %7 = arith.addf %5, %6 : vector<64x96xf32>
    %c0_5 = arith.constant 0 : index
    %c0_6 = arith.constant 0 : index
    %8 = vector.load %arg10[%c0_5, %c0_6] : memref<64x96xf32, #tpu.memory_space<vmem>>, vector<64x96xf32>
    tpu.vector_store %arg10[%c0_5, %c0_6], %7 {strides = array<i32>} : memref<64x96xf32, #tpu.memory_space<vmem>>, vector<64x96xf32>,
    %c0_7 = arith.constant 0 : index
    %c0_8 = arith.constant 0 : index
    %9 = vector.load %arg2[%c0_7, %c0_8] : memref<32x96xf32, #tpu.memory_space<vmem>>, vector<32x96xf32>
    %c0_9 = arith.constant 0 : index
    %c0_10 = arith.constant 0 : index
    %10 = vector.load %arg10[%c0_9, %c0_10] : memref<64x96xf32, #tpu.memory_space<vmem>>, vector<8x96xf32>
    %11 = vector.extract_strided_slice %10 {offsets = [0, 0], sizes = [8, 32], strides = [1, 1]} : vector<8x96xf32> to vector<8x32xf32>
    %12 = arith.negf %11 : vector<8x32xf32>
    %13 = math.exp %12 : vector<8x32xf32>
    %cst_11 = arith.constant 1.000000e+00 : f32
    %14 = vector.broadcast %cst_11 : f32 to vector<8x32xf32>
    %15 = arith.addf %14, %13 : vector<8x32xf32>
    %16 = arith.divf %14, %15 : vector<8x32xf32>
    %17 = vector.extract_strided_slice %10 {offsets = [0, 32], sizes = [8, 32], strides = [1, 1]} : vector<8x96xf32> to vector<8x32xf32>
    %18 = arith.negf %17 : vector<8x32xf32>
    %19 = math.exp %18 : vector<8x32xf32>
    %cst_12 = arith.constant 1.000000e+00 : f32
    %20 = vector.broadcast %cst_12 : f32 to vector<8x32xf32>
    %21 = arith.addf %20, %19 : vector<8x32xf32>
    %22 = arith.divf %20, %21 : vector<8x32xf32>
    %23 = vector.extract_strided_slice %10 {offsets = [0, 64], sizes = [8, 32], strides = [1, 1]} : vector<8x96xf32> to vector<8x32xf32>
    %24 = vector.broadcast %2 : vector<1x32xf32> to vector<8x32xf32>
    %25 = arith.mulf %16, %24 : vector<8x32xf32>
    %26 = arith.addf %23, %25 : vector<8x32xf32>
    %27 = math.tanh %26 : vector<8x32xf32>
    %28 = arith.mulf %22, %27 : vector<8x32xf32>
    %29 = arith.subf %27, %28 : vector<8x32xf32>
    %c0_13 = arith.constant 0 : index
    %c0_14 = arith.constant 0 : index
    %30 = vector.load %arg11[%c0_13, %c0_14] : memref<64x32xf32, #tpu.memory_space<vmem>>, vector<8x32xf32>
    tpu.vector_store %arg11[%c0_13, %c0_14], %29 {strides = array<i32>} : memref<64x32xf32, #tpu.memory_space<vmem>>, vector<8x32xf32>,
    %cst_15 = arith.constant dense<0.000000e+00> : vector<8x96xf32>
    %31 = tpu.matmul %29, %9, %cst_15 {dimension_numbers = #tpu.dot_dimension_numbers<[1], [0], [0], [1], [0, 0, 1, 1], [], []>} : vector<8x32xf32>, vector<32x96xf32>, vector<8x96xf32> -> vector<8x96xf32>
    %c8 = arith.constant 8 : index
    %c0_16 = arith.constant 0 : index
    %32 = vector.load %arg10[%c8, %c0_16] : memref<64x96xf32, #tpu.memory_space<vmem>>, vector<8x96xf32>
    %33 = vector.extract_strided_slice %32 {offsets = [0, 0], sizes = [8, 32], strides = [1, 1]} : vector<8x96xf32> to vector<8x32xf32>
    %34 = vector.extract_strided_slice %31 {offsets = [0, 0], sizes = [8, 32], strides = [1, 1]} : vector<8x96xf32> to vector<8x32xf32>
    %35 = arith.addf %33, %34 : vector<8x32xf32>
    %36 = arith.negf %35 : vector<8x32xf32>
    %37 = math.exp %36 : vector<8x32xf32>
    %cst_17 = arith.constant 1.000000e+00 : f32
    %38 = vector.broadcast %cst_17 : f32 to vector<8x32xf32>
    %39 = arith.addf %38, %37 : vector<8x32xf32>
    %40 = arith.divf %38, %39 : vector<8x32xf32>
    %41 = vector.extract_strided_slice %32 {offsets = [0, 32], sizes = [8, 32], strides = [1, 1]} : vector<8x96xf32> to vector<8x32xf32>
    %42 = vector.extract_strided_slice %31 {offsets = [0, 32], sizes = [8, 32], strides = [1, 1]} : vector<8x96xf32> to vector<8x32xf32>
    %43 = arith.addf %41, %42 : vector<8x32xf32>
    %44 = arith.negf %43 : vector<8x32xf32>
    %45 = math.exp %44 : vector<8x32xf32>
    %cst_18 = arith.constant 1.000000e+00 : f32
    %46 = vector.broadcast %cst_18 : f32 to vector<8x32xf32>
    %47 = arith.addf %46, %45 : vector<8x32xf32>
    %48 = arith.divf %46, %47 : vector<8x32xf32>
    %49 = vector.extract_strided_slice %32 {offsets = [0, 64], sizes = [8, 32], strides = [1, 1]} : vector<8x96xf32> to vector<8x32xf32>
    %50 = vector.extract_strided_slice %31 {offsets = [0, 64], sizes = [8, 32], strides = [1, 1]} : vector<8x96xf32> to vector<8x32xf32>
    %51 = vector.broadcast %2 : vector<1x32xf32> to vector<8x32xf32>
    %52 = arith.addf %50, %51 : vector<8x32xf32>
    %53 = arith.mulf %40, %52 : vector<8x32xf32>
    %54 = arith.addf %49, %53 : vector<8x32xf32>
    %55 = math.tanh %54 : vector<8x32xf32>
    %56 = arith.subf %29, %55 : vector<8x32xf32>
    %57 = arith.mulf %48, %56 : vector<8x32xf32>
    %58 = arith.addf %55, %57 : vector<8x32xf32>
    %c8_19 = arith.constant 8 : index
    %c0_20 = arith.constant 0 : index
    %59 = vector.load %arg11[%c8_19, %c0_20] : memref<64x32xf32, #tpu.memory_space<vmem>>, vector<8x32xf32>
    tpu.vector_store %arg11[%c8_19, %c0_20], %58 {strides = array<i32>} : memref<64x32xf32, #tpu.memory_space<vmem>>, vector<8x32xf32>,
    %cst_21 = arith.constant dense<0.000000e+00> : vector<8x96xf32>
    %60 = tpu.matmul %58, %9, %cst_21 {dimension_numbers = #tpu.dot_dimension_numbers<[1], [0], [0], [1], [0, 0, 1, 1], [], []>} : vector<8x32xf32>, vector<32x96xf32>, vector<8x96xf32> -> vector<8x96xf32>
    %c16 = arith.constant 16 : index
    %c0_22 = arith.constant 0 : index
    %61 = vector.load %arg10[%c16, %c0_22] : memref<64x96xf32, #tpu.memory_space<vmem>>, vector<8x96xf32>
    %62 = vector.extract_strided_slice %61 {offsets = [0, 0], sizes = [8, 32], strides = [1, 1]} : vector<8x96xf32> to vector<8x32xf32>
    %63 = vector.extract_strided_slice %60 {offsets = [0, 0], sizes = [8, 32], strides = [1, 1]} : vector<8x96xf32> to vector<8x32xf32>
    %64 = arith.addf %62, %63 : vector<8x32xf32>
    %65 = arith.negf %64 : vector<8x32xf32>
    %66 = math.exp %65 : vector<8x32xf32>
    %cst_23 = arith.constant 1.000000e+00 : f32
    %67 = vector.broadcast %cst_23 : f32 to vector<8x32xf32>
    %68 = arith.addf %67, %66 : vector<8x32xf32>
    %69 = arith.divf %67, %68 : vector<8x32xf32>
    %70 = vector.extract_strided_slice %61 {offsets = [0, 32], sizes = [8, 32], strides = [1, 1]} : vector<8x96xf32> to vector<8x32xf32>
    %71 = vector.extract_strided_slice %60 {offsets = [0, 32], sizes = [8, 32], strides = [1, 1]} : vector<8x96xf32> to vector<8x32xf32>
    %72 = arith.addf %70, %71 : vector<8x32xf32>
    %73 = arith.negf %72 : vector<8x32xf32>
    %74 = math.exp %73 : vector<8x32xf32>
    %cst_24 = arith.constant 1.000000e+00 : f32
    %75 = vector.broadcast %cst_24 : f32 to vector<8x32xf32>
    %76 = arith.addf %75, %74 : vector<8x32xf32>
    %77 = arith.divf %75, %76 : vector<8x32xf32>
    %78 = vector.extract_strided_slice %61 {offsets = [0, 64], sizes = [8, 32], strides = [1, 1]} : vector<8x96xf32> to vector<8x32xf32>
    %79 = vector.extract_strided_slice %60 {offsets = [0, 64], sizes = [8, 32], strides = [1, 1]} : vector<8x96xf32> to vector<8x32xf32>
    %80 = vector.broadcast %2 : vector<1x32xf32> to vector<8x32xf32>
    %81 = arith.addf %79, %80 : vector<8x32xf32>
    %82 = arith.mulf %69, %81 : vector<8x32xf32>
    %83 = arith.addf %78, %82 : vector<8x32xf32>
    %84 = math.tanh %83 : vector<8x32xf32>
    %85 = arith.subf %58, %84 : vector<8x32xf32>
    %86 = arith.mulf %77, %85 : vector<8x32xf32>
    %87 = arith.addf %84, %86 : vector<8x32xf32>
    %c16_25 = arith.constant 16 : index
    %c0_26 = arith.constant 0 : index
    %88 = vector.load %arg11[%c16_25, %c0_26] : memref<64x32xf32, #tpu.memory_space<vmem>>, vector<8x32xf32>
    tpu.vector_store %arg11[%c16_25, %c0_26], %87 {strides = array<i32>} : memref<64x32xf32, #tpu.memory_space<vmem>>, vector<8x32xf32>,
    %cst_27 = arith.constant dense<0.000000e+00> : vector<8x96xf32>
    %89 = tpu.matmul %87, %9, %cst_27 {dimension_numbers = #tpu.dot_dimension_numbers<[1], [0], [0], [1], [0, 0, 1, 1], [], []>} : vector<8x32xf32>, vector<32x96xf32>, vector<8x96xf32> -> vector<8x96xf32>
    %c24 = arith.constant 24 : index
    %c0_28 = arith.constant 0 : index
    %90 = vector.load %arg10[%c24, %c0_28] : memref<64x96xf32, #tpu.memory_space<vmem>>, vector<8x96xf32>
    %91 = vector.extract_strided_slice %90 {offsets = [0, 0], sizes = [8, 32], strides = [1, 1]} : vector<8x96xf32> to vector<8x32xf32>
    %92 = vector.extract_strided_slice %89 {offsets = [0, 0], sizes = [8, 32], strides = [1, 1]} : vector<8x96xf32> to vector<8x32xf32>
    %93 = arith.addf %91, %92 : vector<8x32xf32>
    %94 = arith.negf %93 : vector<8x32xf32>
    %95 = math.exp %94 : vector<8x32xf32>
    %cst_29 = arith.constant 1.000000e+00 : f32
    %96 = vector.broadcast %cst_29 : f32 to vector<8x32xf32>
    %97 = arith.addf %96, %95 : vector<8x32xf32>
    %98 = arith.divf %96, %97 : vector<8x32xf32>
    %99 = vector.extract_strided_slice %90 {offsets = [0, 32], sizes = [8, 32], strides = [1, 1]} : vector<8x96xf32> to vector<8x32xf32>
    %100 = vector.extract_strided_slice %89 {offsets = [0, 32], sizes = [8, 32], strides = [1, 1]} : vector<8x96xf32> to vector<8x32xf32>
    %101 = arith.addf %99, %100 : vector<8x32xf32>
    %102 = arith.negf %101 : vector<8x32xf32>
    %103 = math.exp %102 : vector<8x32xf32>
    %cst_30 = arith.constant 1.000000e+00 : f32
    %104 = vector.broadcast %cst_30 : f32 to vector<8x32xf32>
    %105 = arith.addf %104, %103 : vector<8x32xf32>
    %106 = arith.divf %104, %105 : vector<8x32xf32>
    %107 = vector.extract_strided_slice %90 {offsets = [0, 64], sizes = [8, 32], strides = [1, 1]} : vector<8x96xf32> to vector<8x32xf32>
    %108 = vector.extract_strided_slice %89 {offsets = [0, 64], sizes = [8, 32], strides = [1, 1]} : vector<8x96xf32> to vector<8x32xf32>
    %109 = vector.broadcast %2 : vector<1x32xf32> to vector<8x32xf32>
    %110 = arith.addf %108, %109 : vector<8x32xf32>
    %111 = arith.mulf %98, %110 : vector<8x32xf32>
    %112 = arith.addf %107, %111 : vector<8x32xf32>
    %113 = math.tanh %112 : vector<8x32xf32>
    %114 = arith.subf %87, %113 : vector<8x32xf32>
    %115 = arith.mulf %106, %114 : vector<8x32xf32>
    %116 = arith.addf %113, %115 : vector<8x32xf32>
    %c24_31 = arith.constant 24 : index
    %c0_32 = arith.constant 0 : index
    %117 = vector.load %arg11[%c24_31, %c0_32] : memref<64x32xf32, #tpu.memory_space<vmem>>, vector<8x32xf32>
    tpu.vector_store %arg11[%c24_31, %c0_32], %116 {strides = array<i32>} : memref<64x32xf32, #tpu.memory_space<vmem>>, vector<8x32xf32>,
    %cst_33 = arith.constant dense<0.000000e+00> : vector<8x96xf32>
    %118 = tpu.matmul %116, %9, %cst_33 {dimension_numbers = #tpu.dot_dimension_numbers<[1], [0], [0], [1], [0, 0, 1, 1], [], []>} : vector<8x32xf32>, vector<32x96xf32>, vector<8x96xf32> -> vector<8x96xf32>
    %c32 = arith.constant 32 : index
    %c0_34 = arith.constant 0 : index
    %119 = vector.load %arg10[%c32, %c0_34] : memref<64x96xf32, #tpu.memory_space<vmem>>, vector<8x96xf32>
    %120 = vector.extract_strided_slice %119 {offsets = [0, 0], sizes = [8, 32], strides = [1, 1]} : vector<8x96xf32> to vector<8x32xf32>
    %121 = vector.extract_strided_slice %118 {offsets = [0, 0], sizes = [8, 32], strides = [1, 1]} : vector<8x96xf32> to vector<8x32xf32>
    %122 = arith.addf %120, %121 : vector<8x32xf32>
    %123 = arith.negf %122 : vector<8x32xf32>
    %124 = math.exp %123 : vector<8x32xf32>
    %cst_35 = arith.constant 1.000000e+00 : f32
    %125 = vector.broadcast %cst_35 : f32 to vector<8x32xf32>
    %126 = arith.addf %125, %124 : vector<8x32xf32>
    %127 = arith.divf %125, %126 : vector<8x32xf32>
    %128 = vector.extract_strided_slice %119 {offsets = [0, 32], sizes = [8, 32], strides = [1, 1]} : vector<8x96xf32> to vector<8x32xf32>
    %129 = vector.extract_strided_slice %118 {offsets = [0, 32], sizes = [8, 32], strides = [1, 1]} : vector<8x96xf32> to vector<8x32xf32>
    %130 = arith.addf %128, %129 : vector<8x32xf32>
    %131 = arith.negf %130 : vector<8x32xf32>
    %132 = math.exp %131 : vector<8x32xf32>
    %cst_36 = arith.constant 1.000000e+00 : f32
    %133 = vector.broadcast %cst_36 : f32 to vector<8x32xf32>
    %134 = arith.addf %133, %132 : vector<8x32xf32>
    %135 = arith.divf %133, %134 : vector<8x32xf32>
    %136 = vector.extract_strided_slice %119 {offsets = [0, 64], sizes = [8, 32], strides = [1, 1]} : vector<8x96xf32> to vector<8x32xf32>
    %137 = vector.extract_strided_slice %118 {offsets = [0, 64], sizes = [8, 32], strides = [1, 1]} : vector<8x96xf32> to vector<8x32xf32>
    %138 = vector.broadcast %2 : vector<1x32xf32> to vector<8x32xf32>
    %139 = arith.addf %137, %138 : vector<8x32xf32>
    %140 = arith.mulf %127, %139 : vector<8x32xf32>
    %141 = arith.addf %136, %140 : vector<8x32xf32>
    %142 = math.tanh %141 : vector<8x32xf32>
    %143 = arith.subf %116, %142 : vector<8x32xf32>
    %144 = arith.mulf %135, %143 : vector<8x32xf32>
    %145 = arith.addf %142, %144 : vector<8x32xf32>
    %c32_37 = arith.constant 32 : index
    %c0_38 = arith.constant 0 : index
    %146 = vector.load %arg11[%c32_37, %c0_38] : memref<64x32xf32, #tpu.memory_space<vmem>>, vector<8x32xf32>
    tpu.vector_store %arg11[%c32_37, %c0_38], %145 {strides = array<i32>} : memref<64x32xf32, #tpu.memory_space<vmem>>, vector<8x32xf32>,
    %cst_39 = arith.constant dense<0.000000e+00> : vector<8x96xf32>
    %147 = tpu.matmul %145, %9, %cst_39 {dimension_numbers = #tpu.dot_dimension_numbers<[1], [0], [0], [1], [0, 0, 1, 1], [], []>} : vector<8x32xf32>, vector<32x96xf32>, vector<8x96xf32> -> vector<8x96xf32>
    %c40 = arith.constant 40 : index
    %c0_40 = arith.constant 0 : index
    %148 = vector.load %arg10[%c40, %c0_40] : memref<64x96xf32, #tpu.memory_space<vmem>>, vector<8x96xf32>
    %149 = vector.extract_strided_slice %148 {offsets = [0, 0], sizes = [8, 32], strides = [1, 1]} : vector<8x96xf32> to vector<8x32xf32>
    %150 = vector.extract_strided_slice %147 {offsets = [0, 0], sizes = [8, 32], strides = [1, 1]} : vector<8x96xf32> to vector<8x32xf32>
    %151 = arith.addf %149, %150 : vector<8x32xf32>
    %152 = arith.negf %151 : vector<8x32xf32>
    %153 = math.exp %152 : vector<8x32xf32>
    %cst_41 = arith.constant 1.000000e+00 : f32
    %154 = vector.broadcast %cst_41 : f32 to vector<8x32xf32>
    %155 = arith.addf %154, %153 : vector<8x32xf32>
    %156 = arith.divf %154, %155 : vector<8x32xf32>
    %157 = vector.extract_strided_slice %148 {offsets = [0, 32], sizes = [8, 32], strides = [1, 1]} : vector<8x96xf32> to vector<8x32xf32>
    %158 = vector.extract_strided_slice %147 {offsets = [0, 32], sizes = [8, 32], strides = [1, 1]} : vector<8x96xf32> to vector<8x32xf32>
    %159 = arith.addf %157, %158 : vector<8x32xf32>
    %160 = arith.negf %159 : vector<8x32xf32>
    %161 = math.exp %160 : vector<8x32xf32>
    %cst_42 = arith.constant 1.000000e+00 : f32
    %162 = vector.broadcast %cst_42 : f32 to vector<8x32xf32>
    %163 = arith.addf %162, %161 : vector<8x32xf32>
    %164 = arith.divf %162, %163 : vector<8x32xf32>
    %165 = vector.extract_strided_slice %148 {offsets = [0, 64], sizes = [8, 32], strides = [1, 1]} : vector<8x96xf32> to vector<8x32xf32>
    %166 = vector.extract_strided_slice %147 {offsets = [0, 64], sizes = [8, 32], strides = [1, 1]} : vector<8x96xf32> to vector<8x32xf32>
    %167 = vector.broadcast %2 : vector<1x32xf32> to vector<8x32xf32>
    %168 = arith.addf %166, %167 : vector<8x32xf32>
    %169 = arith.mulf %156, %168 : vector<8x32xf32>
    %170 = arith.addf %165, %169 : vector<8x32xf32>
    %171 = math.tanh %170 : vector<8x32xf32>
    %172 = arith.subf %145, %171 : vector<8x32xf32>
    %173 = arith.mulf %164, %172 : vector<8x32xf32>
    %174 = arith.addf %171, %173 : vector<8x32xf32>
    %c40_43 = arith.constant 40 : index
    %c0_44 = arith.constant 0 : index
    %175 = vector.load %arg11[%c40_43, %c0_44] : memref<64x32xf32, #tpu.memory_space<vmem>>, vector<8x32xf32>
    tpu.vector_store %arg11[%c40_43, %c0_44], %174 {strides = array<i32>} : memref<64x32xf32, #tpu.memory_space<vmem>>, vector<8x32xf32>,
    %cst_45 = arith.constant dense<0.000000e+00> : vector<8x96xf32>
    %176 = tpu.matmul %174, %9, %cst_45 {dimension_numbers = #tpu.dot_dimension_numbers<[1], [0], [0], [1], [0, 0, 1, 1], [], []>} : vector<8x32xf32>, vector<32x96xf32>, vector<8x96xf32> -> vector<8x96xf32>
    %c48 = arith.constant 48 : index
    %c0_46 = arith.constant 0 : index
    %177 = vector.load %arg10[%c48, %c0_46] : memref<64x96xf32, #tpu.memory_space<vmem>>, vector<8x96xf32>
    %178 = vector.extract_strided_slice %177 {offsets = [0, 0], sizes = [8, 32], strides = [1, 1]} : vector<8x96xf32> to vector<8x32xf32>
    %179 = vector.extract_strided_slice %176 {offsets = [0, 0], sizes = [8, 32], strides = [1, 1]} : vector<8x96xf32> to vector<8x32xf32>
    %180 = arith.addf %178, %179 : vector<8x32xf32>
    %181 = arith.negf %180 : vector<8x32xf32>
    %182 = math.exp %181 : vector<8x32xf32>
    %cst_47 = arith.constant 1.000000e+00 : f32
    %183 = vector.broadcast %cst_47 : f32 to vector<8x32xf32>
    %184 = arith.addf %183, %182 : vector<8x32xf32>
    %185 = arith.divf %183, %184 : vector<8x32xf32>
    %186 = vector.extract_strided_slice %177 {offsets = [0, 32], sizes = [8, 32], strides = [1, 1]} : vector<8x96xf32> to vector<8x32xf32>
    %187 = vector.extract_strided_slice %176 {offsets = [0, 32], sizes = [8, 32], strides = [1, 1]} : vector<8x96xf32> to vector<8x32xf32>
    %188 = arith.addf %186, %187 : vector<8x32xf32>
    %189 = arith.negf %188 : vector<8x32xf32>
    %190 = math.exp %189 : vector<8x32xf32>
    %cst_48 = arith.constant 1.000000e+00 : f32
    %191 = vector.broadcast %cst_48 : f32 to vector<8x32xf32>
    %192 = arith.addf %191, %190 : vector<8x32xf32>
    %193 = arith.divf %191, %192 : vector<8x32xf32>
    %194 = vector.extract_strided_slice %177 {offsets = [0, 64], sizes = [8, 32], strides = [1, 1]} : vector<8x96xf32> to vector<8x32xf32>
    %195 = vector.extract_strided_slice %176 {offsets = [0, 64], sizes = [8, 32], strides = [1, 1]} : vector<8x96xf32> to vector<8x32xf32>
    %196 = vector.broadcast %2 : vector<1x32xf32> to vector<8x32xf32>
    %197 = arith.addf %195, %196 : vector<8x32xf32>
    %198 = arith.mulf %185, %197 : vector<8x32xf32>
    %199 = arith.addf %194, %198 : vector<8x32xf32>
    %200 = math.tanh %199 : vector<8x32xf32>
    %201 = arith.subf %174, %200 : vector<8x32xf32>
    %202 = arith.mulf %193, %201 : vector<8x32xf32>
    %203 = arith.addf %200, %202 : vector<8x32xf32>
    %c48_49 = arith.constant 48 : index
    %c0_50 = arith.constant 0 : index
    %204 = vector.load %arg11[%c48_49, %c0_50] : memref<64x32xf32, #tpu.memory_space<vmem>>, vector<8x32xf32>
    tpu.vector_store %arg11[%c48_49, %c0_50], %203 {strides = array<i32>} : memref<64x32xf32, #tpu.memory_space<vmem>>, vector<8x32xf32>,
    %cst_51 = arith.constant dense<0.000000e+00> : vector<8x96xf32>
    %205 = tpu.matmul %203, %9, %cst_51 {dimension_numbers = #tpu.dot_dimension_numbers<[1], [0], [0], [1], [0, 0, 1, 1], [], []>} : vector<8x32xf32>, vector<32x96xf32>, vector<8x96xf32> -> vector<8x96xf32>
    %c56 = arith.constant 56 : index
    %c0_52 = arith.constant 0 : index
    %206 = vector.load %arg10[%c56, %c0_52] : memref<64x96xf32, #tpu.memory_space<vmem>>, vector<8x96xf32>
    %207 = vector.extract_strided_slice %206 {offsets = [0, 0], sizes = [8, 32], strides = [1, 1]} : vector<8x96xf32> to vector<8x32xf32>
    %208 = vector.extract_strided_slice %205 {offsets = [0, 0], sizes = [8, 32], strides = [1, 1]} : vector<8x96xf32> to vector<8x32xf32>
    %209 = arith.addf %207, %208 : vector<8x32xf32>
    %210 = arith.negf %209 : vector<8x32xf32>
    %211 = math.exp %210 : vector<8x32xf32>
    %cst_53 = arith.constant 1.000000e+00 : f32
    %212 = vector.broadcast %cst_53 : f32 to vector<8x32xf32>
    %213 = arith.addf %212, %211 : vector<8x32xf32>
    %214 = arith.divf %212, %213 : vector<8x32xf32>
    %215 = vector.extract_strided_slice %206 {offsets = [0, 32], sizes = [8, 32], strides = [1, 1]} : vector<8x96xf32> to vector<8x32xf32>
    %216 = vector.extract_strided_slice %205 {offsets = [0, 32], sizes = [8, 32], strides = [1, 1]} : vector<8x96xf32> to vector<8x32xf32>
    %217 = arith.addf %215, %216 : vector<8x32xf32>
    %218 = arith.negf %217 : vector<8x32xf32>
    %219 = math.exp %218 : vector<8x32xf32>
    %cst_54 = arith.constant 1.000000e+00 : f32
    %220 = vector.broadcast %cst_54 : f32 to vector<8x32xf32>
    %221 = arith.addf %220, %219 : vector<8x32xf32>
    %222 = arith.divf %220, %221 : vector<8x32xf32>
    %223 = vector.extract_strided_slice %206 {offsets = [0, 64], sizes = [8, 32], strides = [1, 1]} : vector<8x96xf32> to vector<8x32xf32>
    %224 = vector.extract_strided_slice %205 {offsets = [0, 64], sizes = [8, 32], strides = [1, 1]} : vector<8x96xf32> to vector<8x32xf32>
    %225 = vector.broadcast %2 : vector<1x32xf32> to vector<8x32xf32>
    %226 = arith.addf %224, %225 : vector<8x32xf32>
    %227 = arith.mulf %214, %226 : vector<8x32xf32>
    %228 = arith.addf %223, %227 : vector<8x32xf32>
    %229 = math.tanh %228 : vector<8x32xf32>
    %230 = arith.subf %203, %229 : vector<8x32xf32>
    %231 = arith.mulf %222, %230 : vector<8x32xf32>
    %232 = arith.addf %229, %231 : vector<8x32xf32>
    %c56_55 = arith.constant 56 : index
    %c0_56 = arith.constant 0 : index
    %233 = vector.load %arg11[%c56_55, %c0_56] : memref<64x32xf32, #tpu.memory_space<vmem>>, vector<8x32xf32>
    tpu.vector_store %arg11[%c56_55, %c0_56], %232 {strides = array<i32>} : memref<64x32xf32, #tpu.memory_space<vmem>>, vector<8x32xf32>,
    %c0_57 = arith.constant 0 : index
    %c0_58 = arith.constant 0 : index
    %234 = vector.load %arg6[%c0_57, %c0_58] : memref<2x96xf32, #tpu.memory_space<vmem>>, vector<2x96xf32>
    %235 = vector.extract_strided_slice %234 {offsets = [0, 0], sizes = [1, 96], strides = [1, 1]} : vector<2x96xf32> to vector<1x96xf32>
    %236 = vector.extract_strided_slice %234 {offsets = [1, 64], sizes = [1, 32], strides = [1, 1]} : vector<2x96xf32> to vector<1x32xf32>
    %c0_59 = arith.constant 0 : index
    %c0_60 = arith.constant 0 : index
    %237 = vector.load %arg11[%c0_59, %c0_60] : memref<64x32xf32, #tpu.memory_space<vmem>>, vector<64x32xf32>
    %c0_61 = arith.constant 0 : index
    %c0_62 = arith.constant 0 : index
    %238 = vector.load %arg4[%c0_61, %c0_62] : memref<32x96xf32, #tpu.memory_space<vmem>>, vector<32x96xf32>
    %cst_63 = arith.constant dense<0.000000e+00> : vector<64x96xf32>
    %239 = tpu.matmul %237, %238, %cst_63 {dimension_numbers = #tpu.dot_dimension_numbers<[1], [0], [0], [1], [0, 0, 1, 1], [], []>} : vector<64x32xf32>, vector<32x96xf32>, vector<64x96xf32> -> vector<64x96xf32>
    %240 = vector.broadcast %235 : vector<1x96xf32> to vector<64x96xf32>
    %241 = arith.addf %239, %240 : vector<64x96xf32>
    %c0_64 = arith.constant 0 : index
    %c0_65 = arith.constant 0 : index
    %242 = vector.load %arg10[%c0_64, %c0_65] : memref<64x96xf32, #tpu.memory_space<vmem>>, vector<64x96xf32>
    tpu.vector_store %arg10[%c0_64, %c0_65], %241 {strides = array<i32>} : memref<64x96xf32, #tpu.memory_space<vmem>>, vector<64x96xf32>,
    %c0_66 = arith.constant 0 : index
    %c0_67 = arith.constant 0 : index
    %243 = vector.load %arg5[%c0_66, %c0_67] : memref<32x96xf32, #tpu.memory_space<vmem>>, vector<32x96xf32>
    %c0_68 = arith.constant 0 : index
    %c0_69 = arith.constant 0 : index
    %244 = vector.load %arg10[%c0_68, %c0_69] : memref<64x96xf32, #tpu.memory_space<vmem>>, vector<8x96xf32>
    %245 = vector.extract_strided_slice %244 {offsets = [0, 0], sizes = [8, 32], strides = [1, 1]} : vector<8x96xf32> to vector<8x32xf32>
    %246 = arith.negf %245 : vector<8x32xf32>
    %247 = math.exp %246 : vector<8x32xf32>
    %cst_70 = arith.constant 1.000000e+00 : f32
    %248 = vector.broadcast %cst_70 : f32 to vector<8x32xf32>
    %249 = arith.addf %248, %247 : vector<8x32xf32>
    %250 = arith.divf %248, %249 : vector<8x32xf32>
    %251 = vector.extract_strided_slice %244 {offsets = [0, 32], sizes = [8, 32], strides = [1, 1]} : vector<8x96xf32> to vector<8x32xf32>
    %252 = arith.negf %251 : vector<8x32xf32>
    %253 = math.exp %252 : vector<8x32xf32>
    %cst_71 = arith.constant 1.000000e+00 : f32
    %254 = vector.broadcast %cst_71 : f32 to vector<8x32xf32>
    %255 = arith.addf %254, %253 : vector<8x32xf32>
    %256 = arith.divf %254, %255 : vector<8x32xf32>
    %257 = vector.extract_strided_slice %244 {offsets = [0, 64], sizes = [8, 32], strides = [1, 1]} : vector<8x96xf32> to vector<8x32xf32>
    %258 = vector.broadcast %236 : vector<1x32xf32> to vector<8x32xf32>
    %259 = arith.mulf %250, %258 : vector<8x32xf32>
    %260 = arith.addf %257, %259 : vector<8x32xf32>
    %261 = math.tanh %260 : vector<8x32xf32>
    %262 = arith.mulf %256, %261 : vector<8x32xf32>
    %263 = arith.subf %261, %262 : vector<8x32xf32>
    %cst_72 = arith.constant dense<0.000000e+00> : vector<8x96xf32>
    %264 = tpu.matmul %263, %243, %cst_72 {dimension_numbers = #tpu.dot_dimension_numbers<[1], [0], [0], [1], [0, 0, 1, 1], [], []>} : vector<8x32xf32>, vector<32x96xf32>, vector<8x96xf32> -> vector<8x96xf32>
    %c8_73 = arith.constant 8 : index
    %c0_74 = arith.constant 0 : index
    %265 = vector.load %arg10[%c8_73, %c0_74] : memref<64x96xf32, #tpu.memory_space<vmem>>, vector<8x96xf32>
    %266 = vector.extract_strided_slice %265 {offsets = [0, 0], sizes = [8, 32], strides = [1, 1]} : vector<8x96xf32> to vector<8x32xf32>
    %267 = vector.extract_strided_slice %264 {offsets = [0, 0], sizes = [8, 32], strides = [1, 1]} : vector<8x96xf32> to vector<8x32xf32>
    %268 = arith.addf %266, %267 : vector<8x32xf32>
    %269 = arith.negf %268 : vector<8x32xf32>
    %270 = math.exp %269 : vector<8x32xf32>
    %cst_75 = arith.constant 1.000000e+00 : f32
    %271 = vector.broadcast %cst_75 : f32 to vector<8x32xf32>
    %272 = arith.addf %271, %270 : vector<8x32xf32>
    %273 = arith.divf %271, %272 : vector<8x32xf32>
    %274 = vector.extract_strided_slice %265 {offsets = [0, 32], sizes = [8, 32], strides = [1, 1]} : vector<8x96xf32> to vector<8x32xf32>
    %275 = vector.extract_strided_slice %264 {offsets = [0, 32], sizes = [8, 32], strides = [1, 1]} : vector<8x96xf32> to vector<8x32xf32>
    %276 = arith.addf %274, %275 : vector<8x32xf32>
    %277 = arith.negf %276 : vector<8x32xf32>
    %278 = math.exp %277 : vector<8x32xf32>
    %cst_76 = arith.constant 1.000000e+00 : f32
    %279 = vector.broadcast %cst_76 : f32 to vector<8x32xf32>
    %280 = arith.addf %279, %278 : vector<8x32xf32>
    %281 = arith.divf %279, %280 : vector<8x32xf32>
    %282 = vector.extract_strided_slice %265 {offsets = [0, 64], sizes = [8, 32], strides = [1, 1]} : vector<8x96xf32> to vector<8x32xf32>
    %283 = vector.extract_strided_slice %264 {offsets = [0, 64], sizes = [8, 32], strides = [1, 1]} : vector<8x96xf32> to vector<8x32xf32>
    %284 = vector.broadcast %236 : vector<1x32xf32> to vector<8x32xf32>
    %285 = arith.addf %283, %284 : vector<8x32xf32>
    %286 = arith.mulf %273, %285 : vector<8x32xf32>
    %287 = arith.addf %282, %286 : vector<8x32xf32>
    %288 = math.tanh %287 : vector<8x32xf32>
    %289 = arith.subf %263, %288 : vector<8x32xf32>
    %290 = arith.mulf %281, %289 : vector<8x32xf32>
    %291 = arith.addf %288, %290 : vector<8x32xf32>
    %cst_77 = arith.constant dense<0.000000e+00> : vector<8x96xf32>
    %292 = tpu.matmul %291, %243, %cst_77 {dimension_numbers = #tpu.dot_dimension_numbers<[1], [0], [0], [1], [0, 0, 1, 1], [], []>} : vector<8x32xf32>, vector<32x96xf32>, vector<8x96xf32> -> vector<8x96xf32>
    %c16_78 = arith.constant 16 : index
    %c0_79 = arith.constant 0 : index
    %293 = vector.load %arg10[%c16_78, %c0_79] : memref<64x96xf32, #tpu.memory_space<vmem>>, vector<8x96xf32>
    %294 = vector.extract_strided_slice %293 {offsets = [0, 0], sizes = [8, 32], strides = [1, 1]} : vector<8x96xf32> to vector<8x32xf32>
    %295 = vector.extract_strided_slice %292 {offsets = [0, 0], sizes = [8, 32], strides = [1, 1]} : vector<8x96xf32> to vector<8x32xf32>
    %296 = arith.addf %294, %295 : vector<8x32xf32>
    %297 = arith.negf %296 : vector<8x32xf32>
    %298 = math.exp %297 : vector<8x32xf32>
    %cst_80 = arith.constant 1.000000e+00 : f32
    %299 = vector.broadcast %cst_80 : f32 to vector<8x32xf32>
    %300 = arith.addf %299, %298 : vector<8x32xf32>
    %301 = arith.divf %299, %300 : vector<8x32xf32>
    %302 = vector.extract_strided_slice %293 {offsets = [0, 32], sizes = [8, 32], strides = [1, 1]} : vector<8x96xf32> to vector<8x32xf32>
    %303 = vector.extract_strided_slice %292 {offsets = [0, 32], sizes = [8, 32], strides = [1, 1]} : vector<8x96xf32> to vector<8x32xf32>
    %304 = arith.addf %302, %303 : vector<8x32xf32>
    %305 = arith.negf %304 : vector<8x32xf32>
    %306 = math.exp %305 : vector<8x32xf32>
    %cst_81 = arith.constant 1.000000e+00 : f32
    %307 = vector.broadcast %cst_81 : f32 to vector<8x32xf32>
    %308 = arith.addf %307, %306 : vector<8x32xf32>
    %309 = arith.divf %307, %308 : vector<8x32xf32>
    %310 = vector.extract_strided_slice %293 {offsets = [0, 64], sizes = [8, 32], strides = [1, 1]} : vector<8x96xf32> to vector<8x32xf32>
    %311 = vector.extract_strided_slice %292 {offsets = [0, 64], sizes = [8, 32], strides = [1, 1]} : vector<8x96xf32> to vector<8x32xf32>
    %312 = vector.broadcast %236 : vector<1x32xf32> to vector<8x32xf32>
    %313 = arith.addf %311, %312 : vector<8x32xf32>
    %314 = arith.mulf %301, %313 : vector<8x32xf32>
    %315 = arith.addf %310, %314 : vector<8x32xf32>
    %316 = math.tanh %315 : vector<8x32xf32>
    %317 = arith.subf %291, %316 : vector<8x32xf32>
    %318 = arith.mulf %309, %317 : vector<8x32xf32>
    %319 = arith.addf %316, %318 : vector<8x32xf32>
    %cst_82 = arith.constant dense<0.000000e+00> : vector<8x96xf32>
    %320 = tpu.matmul %319, %243, %cst_82 {dimension_numbers = #tpu.dot_dimension_numbers<[1], [0], [0], [1], [0, 0, 1, 1], [], []>} : vector<8x32xf32>, vector<32x96xf32>, vector<8x96xf32> -> vector<8x96xf32>
    %c24_83 = arith.constant 24 : index
    %c0_84 = arith.constant 0 : index
    %321 = vector.load %arg10[%c24_83, %c0_84] : memref<64x96xf32, #tpu.memory_space<vmem>>, vector<8x96xf32>
    %322 = vector.extract_strided_slice %321 {offsets = [0, 0], sizes = [8, 32], strides = [1, 1]} : vector<8x96xf32> to vector<8x32xf32>
    %323 = vector.extract_strided_slice %320 {offsets = [0, 0], sizes = [8, 32], strides = [1, 1]} : vector<8x96xf32> to vector<8x32xf32>
    %324 = arith.addf %322, %323 : vector<8x32xf32>
    %325 = arith.negf %324 : vector<8x32xf32>
    %326 = math.exp %325 : vector<8x32xf32>
    %cst_85 = arith.constant 1.000000e+00 : f32
    %327 = vector.broadcast %cst_85 : f32 to vector<8x32xf32>
    %328 = arith.addf %327, %326 : vector<8x32xf32>
    %329 = arith.divf %327, %328 : vector<8x32xf32>
    %330 = vector.extract_strided_slice %321 {offsets = [0, 32], sizes = [8, 32], strides = [1, 1]} : vector<8x96xf32> to vector<8x32xf32>
    %331 = vector.extract_strided_slice %320 {offsets = [0, 32], sizes = [8, 32], strides = [1, 1]} : vector<8x96xf32> to vector<8x32xf32>
    %332 = arith.addf %330, %331 : vector<8x32xf32>
    %333 = arith.negf %332 : vector<8x32xf32>
    %334 = math.exp %333 : vector<8x32xf32>
    %cst_86 = arith.constant 1.000000e+00 : f32
    %335 = vector.broadcast %cst_86 : f32 to vector<8x32xf32>
    %336 = arith.addf %335, %334 : vector<8x32xf32>
    %337 = arith.divf %335, %336 : vector<8x32xf32>
    %338 = vector.extract_strided_slice %321 {offsets = [0, 64], sizes = [8, 32], strides = [1, 1]} : vector<8x96xf32> to vector<8x32xf32>
    %339 = vector.extract_strided_slice %320 {offsets = [0, 64], sizes = [8, 32], strides = [1, 1]} : vector<8x96xf32> to vector<8x32xf32>
    %340 = vector.broadcast %236 : vector<1x32xf32> to vector<8x32xf32>
    %341 = arith.addf %339, %340 : vector<8x32xf32>
    %342 = arith.mulf %329, %341 : vector<8x32xf32>
    %343 = arith.addf %338, %342 : vector<8x32xf32>
    %344 = math.tanh %343 : vector<8x32xf32>
    %345 = arith.subf %319, %344 : vector<8x32xf32>
    %346 = arith.mulf %337, %345 : vector<8x32xf32>
    %347 = arith.addf %344, %346 : vector<8x32xf32>
    %cst_87 = arith.constant dense<0.000000e+00> : vector<8x96xf32>
    %348 = tpu.matmul %347, %243, %cst_87 {dimension_numbers = #tpu.dot_dimension_numbers<[1], [0], [0], [1], [0, 0, 1, 1], [], []>} : vector<8x32xf32>, vector<32x96xf32>, vector<8x96xf32> -> vector<8x96xf32>
    %c32_88 = arith.constant 32 : index
    %c0_89 = arith.constant 0 : index
    %349 = vector.load %arg10[%c32_88, %c0_89] : memref<64x96xf32, #tpu.memory_space<vmem>>, vector<8x96xf32>
    %350 = vector.extract_strided_slice %349 {offsets = [0, 0], sizes = [8, 32], strides = [1, 1]} : vector<8x96xf32> to vector<8x32xf32>
    %351 = vector.extract_strided_slice %348 {offsets = [0, 0], sizes = [8, 32], strides = [1, 1]} : vector<8x96xf32> to vector<8x32xf32>
    %352 = arith.addf %350, %351 : vector<8x32xf32>
    %353 = arith.negf %352 : vector<8x32xf32>
    %354 = math.exp %353 : vector<8x32xf32>
    %cst_90 = arith.constant 1.000000e+00 : f32
    %355 = vector.broadcast %cst_90 : f32 to vector<8x32xf32>
    %356 = arith.addf %355, %354 : vector<8x32xf32>
    %357 = arith.divf %355, %356 : vector<8x32xf32>
    %358 = vector.extract_strided_slice %349 {offsets = [0, 32], sizes = [8, 32], strides = [1, 1]} : vector<8x96xf32> to vector<8x32xf32>
    %359 = vector.extract_strided_slice %348 {offsets = [0, 32], sizes = [8, 32], strides = [1, 1]} : vector<8x96xf32> to vector<8x32xf32>
    %360 = arith.addf %358, %359 : vector<8x32xf32>
    %361 = arith.negf %360 : vector<8x32xf32>
    %362 = math.exp %361 : vector<8x32xf32>
    %cst_91 = arith.constant 1.000000e+00 : f32
    %363 = vector.broadcast %cst_91 : f32 to vector<8x32xf32>
    %364 = arith.addf %363, %362 : vector<8x32xf32>
    %365 = arith.divf %363, %364 : vector<8x32xf32>
    %366 = vector.extract_strided_slice %349 {offsets = [0, 64], sizes = [8, 32], strides = [1, 1]} : vector<8x96xf32> to vector<8x32xf32>
    %367 = vector.extract_strided_slice %348 {offsets = [0, 64], sizes = [8, 32], strides = [1, 1]} : vector<8x96xf32> to vector<8x32xf32>
    %368 = vector.broadcast %236 : vector<1x32xf32> to vector<8x32xf32>
    %369 = arith.addf %367, %368 : vector<8x32xf32>
    %370 = arith.mulf %357, %369 : vector<8x32xf32>
    %371 = arith.addf %366, %370 : vector<8x32xf32>
    %372 = math.tanh %371 : vector<8x32xf32>
    %373 = arith.subf %347, %372 : vector<8x32xf32>
    %374 = arith.mulf %365, %373 : vector<8x32xf32>
    %375 = arith.addf %372, %374 : vector<8x32xf32>
    %cst_92 = arith.constant dense<0.000000e+00> : vector<8x96xf32>
    %376 = tpu.matmul %375, %243, %cst_92 {dimension_numbers = #tpu.dot_dimension_numbers<[1], [0], [0], [1], [0, 0, 1, 1], [], []>} : vector<8x32xf32>, vector<32x96xf32>, vector<8x96xf32> -> vector<8x96xf32>
    %c40_93 = arith.constant 40 : index
    %c0_94 = arith.constant 0 : index
    %377 = vector.load %arg10[%c40_93, %c0_94] : memref<64x96xf32, #tpu.memory_space<vmem>>, vector<8x96xf32>
    %378 = vector.extract_strided_slice %377 {offsets = [0, 0], sizes = [8, 32], strides = [1, 1]} : vector<8x96xf32> to vector<8x32xf32>
    %379 = vector.extract_strided_slice %376 {offsets = [0, 0], sizes = [8, 32], strides = [1, 1]} : vector<8x96xf32> to vector<8x32xf32>
    %380 = arith.addf %378, %379 : vector<8x32xf32>
    %381 = arith.negf %380 : vector<8x32xf32>
    %382 = math.exp %381 : vector<8x32xf32>
    %cst_95 = arith.constant 1.000000e+00 : f32
    %383 = vector.broadcast %cst_95 : f32 to vector<8x32xf32>
    %384 = arith.addf %383, %382 : vector<8x32xf32>
    %385 = arith.divf %383, %384 : vector<8x32xf32>
    %386 = vector.extract_strided_slice %377 {offsets = [0, 32], sizes = [8, 32], strides = [1, 1]} : vector<8x96xf32> to vector<8x32xf32>
    %387 = vector.extract_strided_slice %376 {offsets = [0, 32], sizes = [8, 32], strides = [1, 1]} : vector<8x96xf32> to vector<8x32xf32>
    %388 = arith.addf %386, %387 : vector<8x32xf32>
    %389 = arith.negf %388 : vector<8x32xf32>
    %390 = math.exp %389 : vector<8x32xf32>
    %cst_96 = arith.constant 1.000000e+00 : f32
    %391 = vector.broadcast %cst_96 : f32 to vector<8x32xf32>
    %392 = arith.addf %391, %390 : vector<8x32xf32>
    %393 = arith.divf %391, %392 : vector<8x32xf32>
    %394 = vector.extract_strided_slice %377 {offsets = [0, 64], sizes = [8, 32], strides = [1, 1]} : vector<8x96xf32> to vector<8x32xf32>
    %395 = vector.extract_strided_slice %376 {offsets = [0, 64], sizes = [8, 32], strides = [1, 1]} : vector<8x96xf32> to vector<8x32xf32>
    %396 = vector.broadcast %236 : vector<1x32xf32> to vector<8x32xf32>
    %397 = arith.addf %395, %396 : vector<8x32xf32>
    %398 = arith.mulf %385, %397 : vector<8x32xf32>
    %399 = arith.addf %394, %398 : vector<8x32xf32>
    %400 = math.tanh %399 : vector<8x32xf32>
    %401 = arith.subf %375, %400 : vector<8x32xf32>
    %402 = arith.mulf %393, %401 : vector<8x32xf32>
    %403 = arith.addf %400, %402 : vector<8x32xf32>
    %cst_97 = arith.constant dense<0.000000e+00> : vector<8x96xf32>
    %404 = tpu.matmul %403, %243, %cst_97 {dimension_numbers = #tpu.dot_dimension_numbers<[1], [0], [0], [1], [0, 0, 1, 1], [], []>} : vector<8x32xf32>, vector<32x96xf32>, vector<8x96xf32> -> vector<8x96xf32>
    %c48_98 = arith.constant 48 : index
    %c0_99 = arith.constant 0 : index
    %405 = vector.load %arg10[%c48_98, %c0_99] : memref<64x96xf32, #tpu.memory_space<vmem>>, vector<8x96xf32>
    %406 = vector.extract_strided_slice %405 {offsets = [0, 0], sizes = [8, 32], strides = [1, 1]} : vector<8x96xf32> to vector<8x32xf32>
    %407 = vector.extract_strided_slice %404 {offsets = [0, 0], sizes = [8, 32], strides = [1, 1]} : vector<8x96xf32> to vector<8x32xf32>
    %408 = arith.addf %406, %407 : vector<8x32xf32>
    %409 = arith.negf %408 : vector<8x32xf32>
    %410 = math.exp %409 : vector<8x32xf32>
    %cst_100 = arith.constant 1.000000e+00 : f32
    %411 = vector.broadcast %cst_100 : f32 to vector<8x32xf32>
    %412 = arith.addf %411, %410 : vector<8x32xf32>
    %413 = arith.divf %411, %412 : vector<8x32xf32>
    %414 = vector.extract_strided_slice %405 {offsets = [0, 32], sizes = [8, 32], strides = [1, 1]} : vector<8x96xf32> to vector<8x32xf32>
    %415 = vector.extract_strided_slice %404 {offsets = [0, 32], sizes = [8, 32], strides = [1, 1]} : vector<8x96xf32> to vector<8x32xf32>
    %416 = arith.addf %414, %415 : vector<8x32xf32>
    %417 = arith.negf %416 : vector<8x32xf32>
    %418 = math.exp %417 : vector<8x32xf32>
    %cst_101 = arith.constant 1.000000e+00 : f32
    %419 = vector.broadcast %cst_101 : f32 to vector<8x32xf32>
    %420 = arith.addf %419, %418 : vector<8x32xf32>
    %421 = arith.divf %419, %420 : vector<8x32xf32>
    %422 = vector.extract_strided_slice %405 {offsets = [0, 64], sizes = [8, 32], strides = [1, 1]} : vector<8x96xf32> to vector<8x32xf32>
    %423 = vector.extract_strided_slice %404 {offsets = [0, 64], sizes = [8, 32], strides = [1, 1]} : vector<8x96xf32> to vector<8x32xf32>
    %424 = vector.broadcast %236 : vector<1x32xf32> to vector<8x32xf32>
    %425 = arith.addf %423, %424 : vector<8x32xf32>
    %426 = arith.mulf %413, %425 : vector<8x32xf32>
    %427 = arith.addf %422, %426 : vector<8x32xf32>
    %428 = math.tanh %427 : vector<8x32xf32>
    %429 = arith.subf %403, %428 : vector<8x32xf32>
    %430 = arith.mulf %421, %429 : vector<8x32xf32>
    %431 = arith.addf %428, %430 : vector<8x32xf32>
    %cst_102 = arith.constant dense<0.000000e+00> : vector<8x96xf32>
    %432 = tpu.matmul %431, %243, %cst_102 {dimension_numbers = #tpu.dot_dimension_numbers<[1], [0], [0], [1], [0, 0, 1, 1], [], []>} : vector<8x32xf32>, vector<32x96xf32>, vector<8x96xf32> -> vector<8x96xf32>
    %c56_103 = arith.constant 56 : index
    %c0_104 = arith.constant 0 : index
    %433 = vector.load %arg10[%c56_103, %c0_104] : memref<64x96xf32, #tpu.memory_space<vmem>>, vector<8x96xf32>
    %434 = vector.extract_strided_slice %433 {offsets = [0, 0], sizes = [8, 32], strides = [1, 1]} : vector<8x96xf32> to vector<8x32xf32>
    %435 = vector.extract_strided_slice %432 {offsets = [0, 0], sizes = [8, 32], strides = [1, 1]} : vector<8x96xf32> to vector<8x32xf32>
    %436 = arith.addf %434, %435 : vector<8x32xf32>
    %437 = arith.negf %436 : vector<8x32xf32>
    %438 = math.exp %437 : vector<8x32xf32>
    %cst_105 = arith.constant 1.000000e+00 : f32
    %439 = vector.broadcast %cst_105 : f32 to vector<8x32xf32>
    %440 = arith.addf %439, %438 : vector<8x32xf32>
    %441 = arith.divf %439, %440 : vector<8x32xf32>
    %442 = vector.extract_strided_slice %433 {offsets = [0, 32], sizes = [8, 32], strides = [1, 1]} : vector<8x96xf32> to vector<8x32xf32>
    %443 = vector.extract_strided_slice %432 {offsets = [0, 32], sizes = [8, 32], strides = [1, 1]} : vector<8x96xf32> to vector<8x32xf32>
    %444 = arith.addf %442, %443 : vector<8x32xf32>
    %445 = arith.negf %444 : vector<8x32xf32>
    %446 = math.exp %445 : vector<8x32xf32>
    %cst_106 = arith.constant 1.000000e+00 : f32
    %447 = vector.broadcast %cst_106 : f32 to vector<8x32xf32>
    %448 = arith.addf %447, %446 : vector<8x32xf32>
    %449 = arith.divf %447, %448 : vector<8x32xf32>
    %450 = vector.extract_strided_slice %433 {offsets = [0, 64], sizes = [8, 32], strides = [1, 1]} : vector<8x96xf32> to vector<8x32xf32>
    %451 = vector.extract_strided_slice %432 {offsets = [0, 64], sizes = [8, 32], strides = [1, 1]} : vector<8x96xf32> to vector<8x32xf32>
    %452 = vector.broadcast %236 : vector<1x32xf32> to vector<8x32xf32>
    %453 = arith.addf %451, %452 : vector<8x32xf32>
    %454 = arith.mulf %441, %453 : vector<8x32xf32>
    %455 = arith.addf %450, %454 : vector<8x32xf32>
    %456 = math.tanh %455 : vector<8x32xf32>
    %457 = arith.subf %431, %456 : vector<8x32xf32>
    %458 = arith.mulf %449, %457 : vector<8x32xf32>
    %459 = arith.addf %456, %458 : vector<8x32xf32>
    %c0_107 = arith.constant 0 : index
    %c0_108 = arith.constant 0 : index
    %460 = vector.load %arg7[%c0_107, %c0_108] : memref<32x4xf32, #tpu.memory_space<vmem>>, vector<32x4xf32>
    %cst_109 = arith.constant dense<0.000000e+00> : vector<8x4xf32>
    %461 = tpu.matmul %459, %460, %cst_109 {dimension_numbers = #tpu.dot_dimension_numbers<[1], [0], [0], [1], [0, 0, 1, 1], [], []>} : vector<8x32xf32>, vector<32x4xf32>, vector<8x4xf32> -> vector<8x4xf32>
    %c0_110 = arith.constant 0 : index
    %c0_111 = arith.constant 0 : index
    %462 = vector.load %arg8[%c0_110, %c0_111] : memref<1x4xf32, #tpu.memory_space<vmem>>, vector<1x4xf32>
    %463 = vector.broadcast %462 : vector<1x4xf32> to vector<8x4xf32>
    %464 = arith.addf %461, %463 : vector<8x4xf32>
    %c0_112 = arith.constant 0 : index
    %c0_113 = arith.constant 0 : index
    %465 = vector.load %arg9[%c0_112, %c0_113] : memref<8x4xf32, #tpu.memory_space<vmem>>, vector<8x4xf32>
    tpu.vector_store %arg9[%c0_112, %c0_113], %464 {strides = array<i32>} : memref<8x4xf32, #tpu.memory_space<vmem>>, vector<8x4xf32>,
    return
  }
}

</mosaic_0001>

<llo_original>
// kernel: tpu_custom_call.1
$region0: #{tpu_custom_call.1}
  #allocation0 [shape = 'u32[]', space=smem, size = 0x4, offset = 0x4, fixed_abs, tag = 'smem constant byte address 0x4 - core index']
  #allocation1 [shape = 'u32[72,128]{1,0:T(1,128)}', space=vmem, size = 0x9000, scoped, tag = 'internal scratch']
  #allocation2 [shape = 'f32[64,96]{1,0:T(8,128)}', space=vmem, size = 0x8000, scoped, tag = 'scratch operand']
  #allocation3 [shape = 'f32[64,32]{1,0:T(8,128)}', space=vmem, size = 0x8000, scoped, tag = 'scratch operand']
  %s0 = inlined_call_operand.vmem [shape: f32[64,16], index: 0, kind: input, shape index: {}]
  %s1 = inlined_call_operand.hbm [shape: f32[16,96], index: 1, kind: input, shape index: {}]
  %s2 = inlined_call_operand.vmem [shape: f32[32,96], index: 2, kind: input, shape index: {}]
  %s3 = inlined_call_operand.vmem [shape: f32[2,96], index: 3, kind: input, shape index: {}]
  %s4 = inlined_call_operand.vmem [shape: f32[32,96], index: 4, kind: input, shape index: {}]
  %s5 = inlined_call_operand.vmem [shape: f32[32,96], index: 5, kind: input, shape index: {}]
  %s6 = inlined_call_operand.vmem [shape: f32[2,96], index: 6, kind: input, shape index: {}]
  %s7 = inlined_call_operand.vmem [shape: f32[32,4], index: 7, kind: input, shape index: {}]
  %s8 = inlined_call_operand.vmem [shape: f32[1,4], index: 8, kind: input, shape index: {}]
  %s9 = inlined_call_operand.vmem [shape: f32[8,4], index: 9, kind: output, shape index: {}]
  %s10 = sld [smem:[#allocation0]]
  $region50: #{tpu_custom_call.1} parent=0
    _
  %s12 = ssub.s32 1, %s10
  %s13 = scalar_select 0, %s12, %s10
  $region1: #{tpu_custom_call.1} parent=0
    #allocation4 [shape = 'u8[8192]{0}', space=vmem, size = 0x2000, scoped, tag = 'input window, operand 1, single buffered']
    #allocation5 [shape = 's32[1]{0}', space=sflag, size = 0x4, scoped, tag = 'scoped memory for tpu_custom_call.1']
    %14 = vsyncpa [#allocation5], 0
    // Predicated region
    $region2: #{tpu_custom_call.1} parent=1 // pred_check
      _
    $region3: #{tpu_custom_call.1} parent=1 // pred_check_branch
      %16 = sbr.rel (0) target = $region5
    $region4: #{tpu_custom_call.1} parent=1 // pred_region
      _
    $region5: #{tpu_custom_call.1} parent=1 // pred_fallthru
      _
    // Predicated region
    $region6: #{tpu_custom_call.1} parent=1 // pred_check
      _
    $region7: #{tpu_custom_call.1} parent=1 // pred_check_branch
      %18 = sbr.rel (0) target = $region9
    $region8: #{tpu_custom_call.1} parent=1 // pred_region
      %20 = vsyncadd [#allocation5], 0
      %s21 = sshll.u32 %s1, 4
      %s22 = int_to_ptr.hbm [resolvable:$true] %s21
      %s23 = sshll.u32 [#allocation4], 4
      %s24 = int_to_ptr.vmem [resolvable:$true] %s23
      %29 = dma.hbm_to_vmem [thread:$0]  %s22, 256, %s24, [#allocation5], 128, 128, 8
    $region9: #{tpu_custom_call.1} parent=1 // pred_fallthru
      _
    // Predicated region
    $region10: #{tpu_custom_call.1} parent=1 // pred_check
      _
    $region11: #{tpu_custom_call.1} parent=1 // pred_check_branch
      %31 = sbr.rel (0) target = $region13
    $region12: #{tpu_custom_call.1} parent=1 // pred_region
      _
    $region13: #{tpu_custom_call.1} parent=1 // pred_fallthru
      _
    // Predicated region
    $region14: #{tpu_custom_call.1} parent=1 // pred_check
      _
    $region15: #{tpu_custom_call.1} parent=1 // pred_check_branch
      %33 = sbr.rel (0) target = $region17
    $region16: #{tpu_custom_call.1} parent=1 // pred_region
      _
    $region17: #{tpu_custom_call.1} parent=1 // pred_fallthru
      _
    // Predicated region
    $region18: #{tpu_custom_call.1} parent=1 // pred_check
      _
    $region19: #{tpu_custom_call.1} parent=1 // pred_check_branch
      %35 = sbr.rel (0) target = $region21
    $region20: #{tpu_custom_call.1} parent=1 // pred_region
      _
    $region21: #{tpu_custom_call.1} parent=1 // pred_fallthru
      _
    // Predicated region
    $region22: #{tpu_custom_call.1} parent=1 // pred_check
      _
    $region23: #{tpu_custom_call.1} parent=1 // pred_check_branch
      %37 = sbr.rel (0) target = $region25
    $region24: #{tpu_custom_call.1} parent=1 // pred_region
      _
    $region25: #{tpu_custom_call.1} parent=1 // pred_fallthru
      _
    // Predicated region
    $region26: #{tpu_custom_call.1} parent=1 // pred_check
      _
    $region27: #{tpu_custom_call.1} parent=1 // pred_check_branch
      %39 = sbr.rel (0) target = $region29
    $region28: #{tpu_custom_call.1} parent=1 // pred_region
      _
    $region29: #{tpu_custom_call.1} parent=1 // pred_fallthru
      _
    // Predicated region
    $region30: #{tpu_custom_call.1} parent=1 // pred_check
      _
    $region31: #{tpu_custom_call.1} parent=1 // pred_check_branch
      %41 = sbr.rel (0) target = $region33
    $region32: #{tpu_custom_call.1} parent=1 // pred_region
      _
    $region33: #{tpu_custom_call.1} parent=1 // pred_fallthru
      _
    // Predicated region
    $region34: #{tpu_custom_call.1} parent=1 // pred_check
      _
    $region35: #{tpu_custom_call.1} parent=1 // pred_check_branch
      %43 = sbr.rel (0) target = $region37
    $region36: #{tpu_custom_call.1} parent=1 // pred_region
      _
    $region37: #{tpu_custom_call.1} parent=1 // pred_fallthru
      _
    // Predicated region
    $region38: #{tpu_custom_call.1} parent=1 // pred_check
      _
    $region39: #{tpu_custom_call.1} parent=1 // pred_check_branch
      %45 = sbr.rel (0) target = $region41
    $region40: #{tpu_custom_call.1} parent=1 // pred_region
      %47 = dma.done [#allocation5], 256
    $region41: #{tpu_custom_call.1} parent=1 // pred_fallthru
      _
    %v48 = vld [vmem:[%s3] sm:$0x3]
    %v49 = vld [vmem:[%s0] sm:$0xff]
    %v50 = vld [vmem:[%s0 + $0x8] sm:$0xff]
    %v51 = vld [vmem:[%s0 + $0x10] sm:$0xff]
    %v52 = vld [vmem:[%s0 + $0x18] sm:$0xff]
    %v53 = vld [vmem:[%s0 + $0x20] sm:$0xff]
    %v54 = vld [vmem:[%s0 + $0x28] sm:$0xff]
    %v55 = vld [vmem:[%s0 + $0x30] sm:$0xff]
    %v56 = vld [vmem:[%s0 + $0x38] sm:$0xff]
    %v57 = vld [vmem:[#allocation4] sm:$0xff]
    %v58 = vld [vmem:[#allocation4 + $0x8] sm:$0xff]
    %v59 = vperm.slane %v48, 0
    %vm60 = vcmask 130048
    %v62 = vsel %vm60, %v49, 0
    %v65 = vsel %vm60, %v50, 0
    %v68 = vsel %vm60, %v51, 0
    %v71 = vsel %vm60, %v52, 0
    %v74 = vsel %vm60, %v53, 0
    %v77 = vsel %vm60, %v54, 0
    %v80 = vsel %vm60, %v55, 0
    %v83 = vsel %vm60, %v56, 0
    %85 = vmatpush.msra.mxu0 0.0
    %86 = vmatpush.msra.mxu0 0.0
    %87 = vmatpush.msra.mxu0 0.0
    %88 = vmatpush.msra.mxu0 0.0
    %89 = vmatpush.msra.mxu0 0.0
    %90 = vmatpush.msra.mxu0 0.0
    %91 = vmatpush.msra.mxu0 0.0
    %92 = vmatpush.msra.mxu0 0.0
    %93 = vmatpush.msra.mxu0 0.0
    %94 = vmatpush.msra.mxu0 0.0
    %95 = vmatpush.msra.mxu0 0.0
    %96 = vmatpush.msra.mxu0 0.0
    %97 = vmatpush.msra.mxu0 0.0
    %98 = vmatpush.msra.mxu0 0.0
    %99 = vmatpush.msra.mxu0 %v58
    %100 = vmatpush.msra.mxu0 %v57
    %101 = vmatmul.f32.gmra.mxu0 %v62
    %v102 = vpop.f32.mrf.mxu0
    %v103 = vadd.f32 %v59, %v102
    %104 = vmatmul.f32.gmra.mxu0 %v65
    %v105 = vpop.f32.mrf.mxu0
    %v106 = vadd.f32 %v59, %v105
    %107 = vmatmul.f32.gmra.mxu0 %v68
    %v108 = vpop.f32.mrf.mxu0
    %v109 = vadd.f32 %v59, %v108
    %110 = vmatmul.f32.gmra.mxu0 %v71
    %v111 = vpop.f32.mrf.mxu0
    %v112 = vadd.f32 %v59, %v111
    %113 = vmatmul.f32.gmra.mxu0 %v74
    %v114 = vpop.f32.mrf.mxu0
    %v115 = vadd.f32 %v59, %v114
    %116 = vmatmul.f32.gmra.mxu0 %v77
    %v117 = vpop.f32.mrf.mxu0
    %v118 = vadd.f32 %v59, %v117
    %119 = vmatmul.f32.gmra.mxu0 %v80
    %v120 = vpop.f32.mrf.mxu0
    %v121 = vadd.f32 %v59, %v120
    %122 = vmatmul.f32.gmra.mxu0 %v83
    %v123 = vpop.f32.mrf.mxu0
    %v124 = vadd.f32 %v59, %v123
    %125 = vdwg.mxu0
    %vm126 = vcmask 785408
    %127 = vst.msk [vmem:[#allocation2] sm:$0xff] %vm126, %v103
    %128 = vst.msk [vmem:[#allocation2 + $0x8] sm:$0xff] %vm126, %v106
    %129 = vst.msk [vmem:[#allocation2 + $0x10] sm:$0xff] %vm126, %v109
    %130 = vst.msk [vmem:[#allocation2 + $0x18] sm:$0xff] %vm126, %v112
    %131 = vst.msk [vmem:[#allocation2 + $0x20] sm:$0xff] %vm126, %v115
    %132 = vst.msk [vmem:[#allocation2 + $0x28] sm:$0xff] %vm126, %v118
    %133 = vst.msk [vmem:[#allocation2 + $0x30] sm:$0xff] %vm126, %v121
    %134 = vst.msk [vmem:[#allocation2 + $0x38] sm:$0xff] %vm126, %v124
    %v135 = vld [vmem:[%s2] sm:$0xff]
    %v136 = vld [vmem:[%s2 + $0x8] sm:$0xff]
    %v137 = vld [vmem:[%s2 + $0x10] sm:$0xff]
    %v138 = vld [vmem:[%s2 + $0x18] sm:$0xff]
    %v139 = vld [vmem:[#allocation2] sm:$0xff]
    %v140 = vxor.u32 %v139, 2147483648
    %v141 = vmul.f32 %v140, 1.442695
    %v142 = vpow.pop %v141
    %v143 = vadd.f32 %v142, 1.0
    %v144 = vrcp.pop %v143
    %v145 = vmul.f32 %v143, %v144
    %v146 = vsub.f32 1.0, %v145
    %v147 = vmul.f32 %v144, %v146
    %v148 = vadd.f32 %v144, %v147
    %vm149 = vweird.f32 %v143
    %vm150 = vweird.f32 %v144
    %vm151 = vmor %vm149, %vm150
    %v152 = vsel %vm151, %v144, %v148
    %v153 = vand.u32 2147483647, %v143
    %vm154 = vcmp.eq.f32.partialorder %v153, 8.507059e+37
    %v155 = vand.u32 %v143, 2147483648
    %v156 = vor.u32 1.1754944e-38, %v155
    %v157 = vsel %vm154, %v156, %v152
    %v158 = vmul.f32 1.0, %v157
    %v159 = vperm.slane %v48, 1
    %161 = vrot.lane.b32.xlu0 %v159, 64
    %v162 = vpop.permute.xlu0 %161
    %v164 = vmul.f32 %v158, %v162
    %166 = vrot.lane.b32.xlu0 %v164, 64
    %v167 = vpop.permute.xlu0 %166
    %v169 = vadd.f32 %v139, %v167
    %v170 = vtanh.pop %v169
    %172 = vrot.lane.b32.xlu0 %v170, 96
    %v173 = vpop.permute.xlu0 %172
    %v175 = vmul.f32 %v158, %v173
    %177 = vrot.lane.b32.xlu0 %v175, 32
    %v178 = vpop.permute.xlu0 %177
    %v180 = vsub.f32 %v170, %v178
    %182 = vrot.lane.b32.xlu0 %v180, 64
    %v183 = vpop.permute.xlu0 %182
    %vm185 = vcmask 261120
    %186 = vst.msk [vmem:[#allocation3] sm:$0xff] %vm185, %v183
    %v187 = vsel %vm185, %v183, 0
    %189 = vmatpush.msra.mxu0 0.0
    %190 = vmatpush.msra.mxu0 0.0
    %191 = vmatpush.msra.mxu0 0.0
    %192 = vmatpush.msra.mxu0 0.0
    %193 = vmatpush.msra.mxu0 0.0
    %194 = vmatpush.msra.mxu0 0.0
    %195 = vmatpush.msra.mxu0 0.0
    %196 = vmatpush.msra.mxu0 0.0
    %197 = vmatpush.msra.mxu0 0.0
    %198 = vmatpush.msra.mxu0 0.0
    %199 = vmatpush.msra.mxu0 0.0
    %200 = vmatpush.msra.mxu0 0.0
    %201 = vmatpush.msra.mxu0 %v138
    %202 = vmatpush.msra.mxu0 %v137
    %203 = vmatpush.msra.mxu0 %v136
    %204 = vmatpush.msra.mxu0 %v135
    %205 = vmatmul.f32.gmra.mxu0 %v187
    %v206 = vpop.f32.mrf.mxu0
    %v207 = vadd.f32 0.0, %v206
    %208 = vdwg.mxu0
    %v209 = vld [vmem:[#allocation2 + $0x8] sm:$0xff]
    %v210 = vadd.f32 %v209, %v207
    %v211 = vxor.u32 %v210, 2147483648
    %v212 = vmul.f32 %v211, 1.442695
    %v213 = vpow.pop %v212
    %v214 = vadd.f32 %v213, 1.0
    %v215 = vrcp.pop %v214
    %v216 = vmul.f32 %v214, %v215
    %v217 = vsub.f32 1.0, %v216
    %v218 = vmul.f32 %v215, %v217
    %v219 = vadd.f32 %v215, %v218
    %vm220 = vweird.f32 %v214
    %vm221 = vweird.f32 %v215
    %vm222 = vmor %vm220, %vm221
    %v223 = vsel %vm222, %v215, %v219
    %v224 = vand.u32 2147483647, %v214
    %vm225 = vcmp.eq.f32.partialorder %v224, 8.507059e+37
    %v226 = vand.u32 %v214, 2147483648
    %v227 = vor.u32 1.1754944e-38, %v226
    %v228 = vsel %vm225, %v227, %v223
    %v229 = vmul.f32 1.0, %v228
    %v230 = vadd.f32 %v207, %v159
    %232 = vrot.lane.b32.xlu0 %v230, 64
    %v233 = vpop.permute.xlu0 %232
    %v235 = vmul.f32 %v229, %v233
    %237 = vrot.lane.b32.xlu0 %v235, 64
    %v238 = vpop.permute.xlu0 %237
    %v240 = vadd.f32 %v209, %v238
    %v241 = vtanh.pop %v240
    %v242 = vsub.f32 %v180, %v241
    %244 = vrot.lane.b32.xlu0 %v242, 96
    %v245 = vpop.permute.xlu0 %244
    %v247 = vmul.f32 %v229, %v245
    %249 = vrot.lane.b32.xlu0 %v247, 32
    %v250 = vpop.permute.xlu0 %249
    %v252 = vadd.f32 %v241, %v250
    %254 = vrot.lane.b32.xlu0 %v252, 64
    %v255 = vpop.permute.xlu0 %254
    %257 = vst.msk [vmem:[#allocation3 + $0x8] sm:$0xff] %vm185, %v255
    %v258 = vsel %vm185, %v255, 0
    %260 = vmatpush.msra.mxu0 0.0
    %261 = vmatpush.msra.mxu0 0.0
    %262 = vmatpush.msra.mxu0 0.0
    %263 = vmatpush.msra.mxu0 0.0
    %264 = vmatpush.msra.mxu0 0.0
    %265 = vmatpush.msra.mxu0 0.0
    %266 = vmatpush.msra.mxu0 0.0
    %267 = vmatpush.msra.mxu0 0.0
    %268 = vmatpush.msra.mxu0 0.0
    %269 = vmatpush.msra.mxu0 0.0
    %270 = vmatpush.msra.mxu0 0.0
    %271 = vmatpush.msra.mxu0 0.0
    %272 = vmatpush.msra.mxu0 %v138
    %273 = vmatpush.msra.mxu0 %v137
    %274 = vmatpush.msra.mxu0 %v136
    %275 = vmatpush.msra.mxu0 %v135
    %276 = vmatmul.f32.gmra.mxu0 %v258
    %v277 = vpop.f32.mrf.mxu0
    %v278 = vadd.f32 0.0, %v277
    %279 = vdwg.mxu0
    %v280 = vld [vmem:[#allocation2 + $0x10] sm:$0xff]
    %v281 = vadd.f32 %v280, %v278
    %v282 = vxor.u32 %v281, 2147483648
    %v283 = vmul.f32 %v282, 1.442695
    %v284 = vpow.pop %v283
    %v285 = vadd.f32 %v284, 1.0
    %v286 = vrcp.pop %v285
    %v287 = vmul.f32 %v285, %v286
    %v288 = vsub.f32 1.0, %v287
    %v289 = vmul.f32 %v286, %v288
    %v290 = vadd.f32 %v286, %v289
    %vm291 = vweird.f32 %v285
    %vm292 = vweird.f32 %v286
    %vm293 = vmor %vm291, %vm292
    %v294 = vsel %vm293, %v286, %v290
    %v295 = vand.u32 2147483647, %v285
    %vm296 = vcmp.eq.f32.partialorder %v295, 8.507059e+37
    %v297 = vand.u32 %v285, 2147483648
    %v298 = vor.u32 1.1754944e-38, %v297
    %v299 = vsel %vm296, %v298, %v294
    %v300 = vmul.f32 1.0, %v299
    %v301 = vadd.f32 %v278, %v159
    %303 = vrot.lane.b32.xlu0 %v301, 64
    %v304 = vpop.permute.xlu0 %303
    %v306 = vmul.f32 %v300, %v304
    %308 = vrot.lane.b32.xlu0 %v306, 64
    %v309 = vpop.permute.xlu0 %308
    %v311 = vadd.f32 %v280, %v309
    %v312 = vtanh.pop %v311
    %v313 = vsub.f32 %v252, %v312
    %315 = vrot.lane.b32.xlu0 %v313, 96
    %v316 = vpop.permute.xlu0 %315
    %v318 = vmul.f32 %v300, %v316
    %320 = vrot.lane.b32.xlu0 %v318, 32
    %v321 = vpop.permute.xlu0 %320
    %v323 = vadd.f32 %v312, %v321
    %325 = vrot.lane.b32.xlu0 %v323, 64
    %v326 = vpop.permute.xlu0 %325
    %328 = vst.msk [vmem:[#allocation3 + $0x10] sm:$0xff] %vm185, %v326
    %v329 = vsel %vm185, %v326, 0
    %331 = vmatpush.msra.mxu0 0.0
    %332 = vmatpush.msra.mxu0 0.0
    %333 = vmatpush.msra.mxu0 0.0
    %334 = vmatpush.msra.mxu0 0.0
    %335 = vmatpush.msra.mxu0 0.0
    %336 = vmatpush.msra.mxu0 0.0
    %337 = vmatpush.msra.mxu0 0.0
    %338 = vmatpush.msra.mxu0 0.0
    %339 = vmatpush.msra.mxu0 0.0
    %340 = vmatpush.msra.mxu0 0.0
    %341 = vmatpush.msra.mxu0 0.0
    %342 = vmatpush.msra.mxu0 0.0
    %343 = vmatpush.msra.mxu0 %v138
    %344 = vmatpush.msra.mxu0 %v137
    %345 = vmatpush.msra.mxu0 %v136
    %346 = vmatpush.msra.mxu0 %v135
    %347 = vmatmul.f32.gmra.mxu0 %v329
    %v348 = vpop.f32.mrf.mxu0
    %v349 = vadd.f32 0.0, %v348
    %350 = vdwg.mxu0
    %v351 = vld [vmem:[#allocation2 + $0x18] sm:$0xff]
    %v352 = vadd.f32 %v351, %v349
    %v353 = vxor.u32 %v352, 2147483648
    %v354 = vmul.f32 %v353, 1.442695
    %v355 = vpow.pop %v354
    %v356 = vadd.f32 %v355, 1.0
    %v357 = vrcp.pop %v356
    %v358 = vmul.f32 %v356, %v357
    %v359 = vsub.f32 1.0, %v358
    %v360 = vmul.f32 %v357, %v359
    %v361 = vadd.f32 %v357, %v360
    %vm362 = vweird.f32 %v356
    %vm363 = vweird.f32 %v357
    %vm364 = vmor %vm362, %vm363
    %v365 = vsel %vm364, %v357, %v361
    %v366 = vand.u32 2147483647, %v356
    %vm367 = vcmp.eq.f32.partialorder %v366, 8.507059e+37
    %v368 = vand.u32 %v356, 2147483648
    %v369 = vor.u32 1.1754944e-38, %v368
    %v370 = vsel %vm367, %v369, %v365
    %v371 = vmul.f32 1.0, %v370
    %v372 = vadd.f32 %v349, %v159
    %374 = vrot.lane.b32.xlu0 %v372, 64
    %v375 = vpop.permute.xlu0 %374
    %v377 = vmul.f32 %v371, %v375
    %379 = vrot.lane.b32.xlu0 %v377, 64
    %v380 = vpop.permute.xlu0 %379
    %v382 = vadd.f32 %v351, %v380
    %v383 = vtanh.pop %v382
    %v384 = vsub.f32 %v323, %v383
    %386 = vrot.lane.b32.xlu0 %v384, 96
    %v387 = vpop.permute.xlu0 %386
    %v389 = vmul.f32 %v371, %v387
    %391 = vrot.lane.b32.xlu0 %v389, 32
    %v392 = vpop.permute.xlu0 %391
    %v394 = vadd.f32 %v383, %v392
    %396 = vrot.lane.b32.xlu0 %v394, 64
    %v397 = vpop.permute.xlu0 %396
    %399 = vst.msk [vmem:[#allocation3 + $0x18] sm:$0xff] %vm185, %v397
    %v400 = vsel %vm185, %v397, 0
    %402 = vmatpush.msra.mxu0 0.0
    %403 = vmatpush.msra.mxu0 0.0
    %404 = vmatpush.msra.mxu0 0.0
    %405 = vmatpush.msra.mxu0 0.0
    %406 = vmatpush.msra.mxu0 0.0
    %407 = vmatpush.msra.mxu0 0.0
    %408 = vmatpush.msra.mxu0 0.0
    %409 = vmatpush.msra.mxu0 0.0
    %410 = vmatpush.msra.mxu0 0.0
    %411 = vmatpush.msra.mxu0 0.0
    %412 = vmatpush.msra.mxu0 0.0
    %413 = vmatpush.msra.mxu0 0.0
    %414 = vmatpush.msra.mxu0 %v138
    %415 = vmatpush.msra.mxu0 %v137
    %416 = vmatpush.msra.mxu0 %v136
    %417 = vmatpush.msra.mxu0 %v135
    %418 = vmatmul.f32.gmra.mxu0 %v400
    %v419 = vpop.f32.mrf.mxu0
    %v420 = vadd.f32 0.0, %v419
    %421 = vdwg.mxu0
    %v422 = vld [vmem:[#allocation2 + $0x20] sm:$0xff]
    %v423 = vadd.f32 %v422, %v420
    %v424 = vxor.u32 %v423, 2147483648
    %v425 = vmul.f32 %v424, 1.442695
    %v426 = vpow.pop %v425
    %v427 = vadd.f32 %v426, 1.0
    %v428 = vrcp.pop %v427
    %v429 = vmul.f32 %v427, %v428
    %v430 = vsub.f32 1.0, %v429
    %v431 = vmul.f32 %v428, %v430
    %v432 = vadd.f32 %v428, %v431
    %vm433 = vweird.f32 %v427
    %vm434 = vweird.f32 %v428
    %vm435 = vmor %vm433, %vm434
    %v436 = vsel %vm435, %v428, %v432
    %v437 = vand.u32 2147483647, %v427
    %vm438 = vcmp.eq.f32.partialorder %v437, 8.507059e+37
    %v439 = vand.u32 %v427, 2147483648
    %v440 = vor.u32 1.1754944e-38, %v439
    %v441 = vsel %vm438, %v440, %v436
    %v442 = vmul.f32 1.0, %v441
    %v443 = vadd.f32 %v420, %v159
    %445 = vrot.lane.b32.xlu0 %v443, 64
    %v446 = vpop.permute.xlu0 %445
    %v448 = vmul.f32 %v442, %v446
    %450 = vrot.lane.b32.xlu0 %v448, 64
    %v451 = vpop.permute.xlu0 %450
    %v453 = vadd.f32 %v422, %v451
    %v454 = vtanh.pop %v453
    %v455 = vsub.f32 %v394, %v454
    %457 = vrot.lane.b32.xlu0 %v455, 96
    %v458 = vpop.permute.xlu0 %457
    %v460 = vmul.f32 %v442, %v458
    %462 = vrot.lane.b32.xlu0 %v460, 32
    %v463 = vpop.permute.xlu0 %462
    %v465 = vadd.f32 %v454, %v463
    %467 = vrot.lane.b32.xlu0 %v465, 64
    %v468 = vpop.permute.xlu0 %467
    %470 = vst.msk [vmem:[#allocation3 + $0x20] sm:$0xff] %vm185, %v468
    %v471 = vsel %vm185, %v468, 0
    %473 = vmatpush.msra.mxu0 0.0
    %474 = vmatpush.msra.mxu0 0.0
    %475 = vmatpush.msra.mxu0 0.0
    %476 = vmatpush.msra.mxu0 0.0
    %477 = vmatpush.msra.mxu0 0.0
    %478 = vmatpush.msra.mxu0 0.0
    %479 = vmatpush.msra.mxu0 0.0
    %480 = vmatpush.msra.mxu0 0.0
    %481 = vmatpush.msra.mxu0 0.0
    %482 = vmatpush.msra.mxu0 0.0
    %483 = vmatpush.msra.mxu0 0.0
    %484 = vmatpush.msra.mxu0 0.0
    %485 = vmatpush.msra.mxu0 %v138
    %486 = vmatpush.msra.mxu0 %v137
    %487 = vmatpush.msra.mxu0 %v136
    %488 = vmatpush.msra.mxu0 %v135
    %489 = vmatmul.f32.gmra.mxu0 %v471
    %v490 = vpop.f32.mrf.mxu0
    %v491 = vadd.f32 0.0, %v490
    %492 = vdwg.mxu0
    %v493 = vld [vmem:[#allocation2 + $0x28] sm:$0xff]
    %v494 = vadd.f32 %v493, %v491
    %v495 = vxor.u32 %v494, 2147483648
    %v496 = vmul.f32 %v495, 1.442695
    %v497 = vpow.pop %v496
    %v498 = vadd.f32 %v497, 1.0
    %v499 = vrcp.pop %v498
    %v500 = vmul.f32 %v498, %v499
    %v501 = vsub.f32 1.0, %v500
    %v502 = vmul.f32 %v499, %v501
    %v503 = vadd.f32 %v499, %v502
    %vm504 = vweird.f32 %v498
    %vm505 = vweird.f32 %v499
    %vm506 = vmor %vm504, %vm505
    %v507 = vsel %vm506, %v499, %v503
    %v508 = vand.u32 2147483647, %v498
    %vm509 = vcmp.eq.f32.partialorder %v508, 8.507059e+37
    %v510 = vand.u32 %v498, 2147483648
    %v511 = vor.u32 1.1754944e-38, %v510
    %v512 = vsel %vm509, %v511, %v507
    %v513 = vmul.f32 1.0, %v512
    %v514 = vadd.f32 %v491, %v159
    %516 = vrot.lane.b32.xlu0 %v514, 64
    %v517 = vpop.permute.xlu0 %516
    %v519 = vmul.f32 %v513, %v517
    %521 = vrot.lane.b32.xlu0 %v519, 64
    %v522 = vpop.permute.xlu0 %521
    %v524 = vadd.f32 %v493, %v522
    %v525 = vtanh.pop %v524
    %v526 = vsub.f32 %v465, %v525
    %528 = vrot.lane.b32.xlu0 %v526, 96
    %v529 = vpop.permute.xlu0 %528
    %v531 = vmul.f32 %v513, %v529
    %533 = vrot.lane.b32.xlu0 %v531, 32
    %v534 = vpop.permute.xlu0 %533
    %v536 = vadd.f32 %v525, %v534
    %538 = vrot.lane.b32.xlu0 %v536, 64
    %v539 = vpop.permute.xlu0 %538
    %541 = vst.msk [vmem:[#allocation3 + $0x28] sm:$0xff] %vm185, %v539
    %v542 = vsel %vm185, %v539, 0
    %544 = vmatpush.msra.mxu0 0.0
    %545 = vmatpush.msra.mxu0 0.0
    %546 = vmatpush.msra.mxu0 0.0
    %547 = vmatpush.msra.mxu0 0.0
    %548 = vmatpush.msra.mxu0 0.0
    %549 = vmatpush.msra.mxu0 0.0
    %550 = vmatpush.msra.mxu0 0.0
    %551 = vmatpush.msra.mxu0 0.0
    %552 = vmatpush.msra.mxu0 0.0
    %553 = vmatpush.msra.mxu0 0.0
    %554 = vmatpush.msra.mxu0 0.0
    %555 = vmatpush.msra.mxu0 0.0
    %556 = vmatpush.msra.mxu0 %v138
    %557 = vmatpush.msra.mxu0 %v137
    %558 = vmatpush.msra.mxu0 %v136
    %559 = vmatpush.msra.mxu0 %v135
    %560 = vmatmul.f32.gmra.mxu0 %v542
    %v561 = vpop.f32.mrf.mxu0
    %v562 = vadd.f32 0.0, %v561
    %563 = vdwg.mxu0
    %v564 = vld [vmem:[#allocation2 + $0x30] sm:$0xff]
    %v565 = vadd.f32 %v564, %v562
    %v566 = vxor.u32 %v565, 2147483648
    %v567 = vmul.f32 %v566, 1.442695
    %v568 = vpow.pop %v567
    %v569 = vadd.f32 %v568, 1.0
    %v570 = vrcp.pop %v569
    %v571 = vmul.f32 %v569, %v570
    %v572 = vsub.f32 1.0, %v571
    %v573 = vmul.f32 %v570, %v572
    %v574 = vadd.f32 %v570, %v573
    %vm575 = vweird.f32 %v569
    %vm576 = vweird.f32 %v570
    %vm577 = vmor %vm575, %vm576
    %v578 = vsel %vm577, %v570, %v574
    %v579 = vand.u32 2147483647, %v569
    %vm580 = vcmp.eq.f32.partialorder %v579, 8.507059e+37
    %v581 = vand.u32 %v569, 2147483648
    %v582 = vor.u32 1.1754944e-38, %v581
    %v583 = vsel %vm580, %v582, %v578
    %v584 = vmul.f32 1.0, %v583
    %v585 = vadd.f32 %v562, %v159
    %587 = vrot.lane.b32.xlu0 %v585, 64
    %v588 = vpop.permute.xlu0 %587
    %v590 = vmul.f32 %v584, %v588
    %592 = vrot.lane.b32.xlu0 %v590, 64
    %v593 = vpop.permute.xlu0 %592
    %v595 = vadd.f32 %v564, %v593
    %v596 = vtanh.pop %v595
    %v597 = vsub.f32 %v536, %v596
    %599 = vrot.lane.b32.xlu0 %v597, 96
    %v600 = vpop.permute.xlu0 %599
    %v602 = vmul.f32 %v584, %v600
    %604 = vrot.lane.b32.xlu0 %v602, 32
    %v605 = vpop.permute.xlu0 %604
    %v607 = vadd.f32 %v596, %v605
    %609 = vrot.lane.b32.xlu0 %v607, 64
    %v610 = vpop.permute.xlu0 %609
    %612 = vst.msk [vmem:[#allocation3 + $0x30] sm:$0xff] %vm185, %v610
    %v613 = vsel %vm185, %v610, 0
    %615 = vmatpush.msra.mxu0 0.0
    %616 = vmatpush.msra.mxu0 0.0
    %617 = vmatpush.msra.mxu0 0.0
    %618 = vmatpush.msra.mxu0 0.0
    %619 = vmatpush.msra.mxu0 0.0
    %620 = vmatpush.msra.mxu0 0.0
    %621 = vmatpush.msra.mxu0 0.0
    %622 = vmatpush.msra.mxu0 0.0
    %623 = vmatpush.msra.mxu0 0.0
    %624 = vmatpush.msra.mxu0 0.0
    %625 = vmatpush.msra.mxu0 0.0
    %626 = vmatpush.msra.mxu0 0.0
    %627 = vmatpush.msra.mxu0 %v138
    %628 = vmatpush.msra.mxu0 %v137
    %629 = vmatpush.msra.mxu0 %v136
    %630 = vmatpush.msra.mxu0 %v135
    %631 = vmatmul.f32.gmra.mxu0 %v613
    %v632 = vpop.f32.mrf.mxu0
    %v633 = vadd.f32 0.0, %v632
    %634 = vdwg.mxu0
    %v635 = vld [vmem:[#allocation2 + $0x38] sm:$0xff]
    %v636 = vadd.f32 %v635, %v633
    %v637 = vxor.u32 %v636, 2147483648
    %v638 = vmul.f32 %v637, 1.442695
    %v639 = vpow.pop %v638
    %v640 = vadd.f32 %v639, 1.0
    %v641 = vrcp.pop %v640
    %v642 = vmul.f32 %v640, %v641
    %v643 = vsub.f32 1.0, %v642
    %v644 = vmul.f32 %v641, %v643
    %v645 = vadd.f32 %v641, %v644
    %vm646 = vweird.f32 %v640
    %vm647 = vweird.f32 %v641
    %vm648 = vmor %vm646, %vm647
    %v649 = vsel %vm648, %v641, %v645
    %v650 = vand.u32 2147483647, %v640
    %vm651 = vcmp.eq.f32.partialorder %v650, 8.507059e+37
    %v652 = vand.u32 %v640, 2147483648
    %v653 = vor.u32 1.1754944e-38, %v652
    %v654 = vsel %vm651, %v653, %v649
    %v655 = vmul.f32 1.0, %v654
    %v656 = vadd.f32 %v633, %v159
    %658 = vrot.lane.b32.xlu0 %v656, 64
    %v659 = vpop.permute.xlu0 %658
    %v661 = vmul.f32 %v655, %v659
    %663 = vrot.lane.b32.xlu0 %v661, 64
    %v664 = vpop.permute.xlu0 %663
    %v666 = vadd.f32 %v635, %v664
    %v667 = vtanh.pop %v666
    %v668 = vsub.f32 %v607, %v667
    %670 = vrot.lane.b32.xlu0 %v668, 96
    %v671 = vpop.permute.xlu0 %670
    %v673 = vmul.f32 %v655, %v671
    %675 = vrot.lane.b32.xlu0 %v673, 32
    %v676 = vpop.permute.xlu0 %675
    %v678 = vadd.f32 %v667, %v676
    %680 = vrot.lane.b32.xlu0 %v678, 64
    %v681 = vpop.permute.xlu0 %680
    %683 = vst.msk [vmem:[#allocation3 + $0x38] sm:$0xff] %vm185, %v681
    %v684 = vld [vmem:[%s6] sm:$0x3]
    %v685 = vld [vmem:[#allocation3] sm:$0xff]
    %v686 = vld [vmem:[#allocation3 + $0x8] sm:$0xff]
    %v687 = vld [vmem:[#allocation3 + $0x10] sm:$0xff]
    %v688 = vld [vmem:[#allocation3 + $0x18] sm:$0xff]
    %v689 = vld [vmem:[#allocation3 + $0x20] sm:$0xff]
    %v690 = vld [vmem:[#allocation3 + $0x28] sm:$0xff]
    %v691 = vld [vmem:[#allocation3 + $0x30] sm:$0xff]
    %v692 = vld [vmem:[#allocation3 + $0x38] sm:$0xff]
    %v693 = vld [vmem:[%s4] sm:$0xff]
    %v694 = vld [vmem:[%s4 + $0x8] sm:$0xff]
    %v695 = vld [vmem:[%s4 + $0x10] sm:$0xff]
    %v696 = vld [vmem:[%s4 + $0x18] sm:$0xff]
    %v697 = vperm.slane %v684, 0
    %v699 = vsel %vm185, %v685, 0
    %v702 = vsel %vm185, %v686, 0
    %v705 = vsel %vm185, %v687, 0
    %v708 = vsel %vm185, %v688, 0
    %v711 = vsel %vm185, %v689, 0
    %v714 = vsel %vm185, %v690, 0
    %v717 = vsel %vm185, %v691, 0
    %v720 = vsel %vm185, %v692, 0
    %722 = vmatpush.msra.mxu0 0.0
    %723 = vmatpush.msra.mxu0 0.0
    %724 = vmatpush.msra.mxu0 0.0
    %725 = vmatpush.msra.mxu0 0.0
    %726 = vmatpush.msra.mxu0 0.0
    %727 = vmatpush.msra.mxu0 0.0
    %728 = vmatpush.msra.mxu0 0.0
    %729 = vmatpush.msra.mxu0 0.0
    %730 = vmatpush.msra.mxu0 0.0
    %731 = vmatpush.msra.mxu0 0.0
    %732 = vmatpush.msra.mxu0 0.0
    %733 = vmatpush.msra.mxu0 0.0
    %734 = vmatpush.msra.mxu0 %v696
    %735 = vmatpush.msra.mxu0 %v695
    %736 = vmatpush.msra.mxu0 %v694
    %737 = vmatpush.msra.mxu0 %v693
    %738 = vmatmul.f32.gmra.mxu0 %v699
    %v739 = vpop.f32.mrf.mxu0
    %v740 = vadd.f32 %v697, %v739
    %741 = vmatmul.f32.gmra.mxu0 %v702
    %v742 = vpop.f32.mrf.mxu0
    %v743 = vadd.f32 %v697, %v742
    %744 = vmatmul.f32.gmra.mxu0 %v705
    %v745 = vpop.f32.mrf.mxu0
    %v746 = vadd.f32 %v697, %v745
    %747 = vmatmul.f32.gmra.mxu0 %v708
    %v748 = vpop.f32.mrf.mxu0
    %v749 = vadd.f32 %v697, %v748
    %750 = vmatmul.f32.gmra.mxu0 %v711
    %v751 = vpop.f32.mrf.mxu0
    %v752 = vadd.f32 %v697, %v751
    %753 = vmatmul.f32.gmra.mxu0 %v714
    %v754 = vpop.f32.mrf.mxu0
    %v755 = vadd.f32 %v697, %v754
    %756 = vmatmul.f32.gmra.mxu0 %v717
    %v757 = vpop.f32.mrf.mxu0
    %v758 = vadd.f32 %v697, %v757
    %759 = vmatmul.f32.gmra.mxu0 %v720
    %v760 = vpop.f32.mrf.mxu0
    %v761 = vadd.f32 %v697, %v760
    %762 = vdwg.mxu0
    %763 = vst.msk [vmem:[#allocation2] sm:$0xff] %vm126, %v740
    %764 = vst.msk [vmem:[#allocation2 + $0x8] sm:$0xff] %vm126, %v743
    %765 = vst.msk [vmem:[#allocation2 + $0x10] sm:$0xff] %vm126, %v746
    %766 = vst.msk [vmem:[#allocation2 + $0x18] sm:$0xff] %vm126, %v749
    %767 = vst.msk [vmem:[#allocation2 + $0x20] sm:$0xff] %vm126, %v752
    %768 = vst.msk [vmem:[#allocation2 + $0x28] sm:$0xff] %vm126, %v755
    %769 = vst.msk [vmem:[#allocation2 + $0x30] sm:$0xff] %vm126, %v758
    %770 = vst.msk [vmem:[#allocation2 + $0x38] sm:$0xff] %vm126, %v761
    %v771 = vld [vmem:[%s5] sm:$0xff]
    %v772 = vld [vmem:[%s5 + $0x8] sm:$0xff]
    %v773 = vld [vmem:[%s5 + $0x10] sm:$0xff]
    %v774 = vld [vmem:[%s5 + $0x18] sm:$0xff]
    %v775 = vld [vmem:[#allocation2] sm:$0xff]
    %v776 = vxor.u32 %v775, 2147483648
    %v777 = vmul.f32 %v776, 1.442695
    %v778 = vpow.pop %v777
    %v779 = vadd.f32 %v778, 1.0
    %v780 = vrcp.pop %v779
    %v781 = vmul.f32 %v779, %v780
    %v782 = vsub.f32 1.0, %v781
    %v783 = vmul.f32 %v780, %v782
    %v784 = vadd.f32 %v780, %v783
    %vm785 = vweird.f32 %v779
    %vm786 = vweird.f32 %v780
    %vm787 = vmor %vm785, %vm786
    %v788 = vsel %vm787, %v780, %v784
    %v789 = vand.u32 2147483647, %v779
    %vm790 = vcmp.eq.f32.partialorder %v789, 8.507059e+37
    %v791 = vand.u32 %v779, 2147483648
    %v792 = vor.u32 1.1754944e-38, %v791
    %v793 = vsel %vm790, %v792, %v788
    %v794 = vmul.f32 1.0, %v793
    %v795 = vperm.slane %v684, 1
    %797 = vrot.lane.b32.xlu0 %v795, 64
    %v798 = vpop.permute.xlu0 %797
    %v800 = vmul.f32 %v794, %v798
    %802 = vrot.lane.b32.xlu0 %v800, 64
    %v803 = vpop.permute.xlu0 %802
    %v805 = vadd.f32 %v775, %v803
    %v806 = vtanh.pop %v805
    %808 = vrot.lane.b32.xlu0 %v806, 96
    %v809 = vpop.permute.xlu0 %808
    %v811 = vmul.f32 %v794, %v809
    %813 = vrot.lane.b32.xlu0 %v811, 32
    %v814 = vpop.permute.xlu0 %813
    %v816 = vsub.f32 %v806, %v814
    %818 = vrot.lane.b32.xlu0 %v816, 64
    %v819 = vpop.permute.xlu0 %818
    %v820 = vsel %vm185, %v819, 0
    %822 = vmatpush.msra.mxu0 0.0
    %823 = vmatpush.msra.mxu0 0.0
    %824 = vmatpush.msra.mxu0 0.0
    %825 = vmatpush.msra.mxu0 0.0
    %826 = vmatpush.msra.mxu0 0.0
    %827 = vmatpush.msra.mxu0 0.0
    %828 = vmatpush.msra.mxu0 0.0
    %829 = vmatpush.msra.mxu0 0.0
    %830 = vmatpush.msra.mxu0 0.0
    %831 = vmatpush.msra.mxu0 0.0
    %832 = vmatpush.msra.mxu0 0.0
    %833 = vmatpush.msra.mxu0 0.0
    %834 = vmatpush.msra.mxu0 %v774
    %835 = vmatpush.msra.mxu0 %v773
    %836 = vmatpush.msra.mxu0 %v772
    %837 = vmatpush.msra.mxu0 %v771
    %838 = vmatmul.f32.gmra.mxu0 %v820
    %v839 = vpop.f32.mrf.mxu0
    %v840 = vadd.f32 0.0, %v839
    %841 = vdwg.mxu0
    %v842 = vld [vmem:[#allocation2 + $0x8] sm:$0xff]
    %v843 = vadd.f32 %v842, %v840
    %v844 = vxor.u32 %v843, 2147483648
    %v845 = vmul.f32 %v844, 1.442695
    %v846 = vpow.pop %v845
    %v847 = vadd.f32 %v846, 1.0
    %v848 = vrcp.pop %v847
    %v849 = vmul.f32 %v847, %v848
    %v850 = vsub.f32 1.0, %v849
    %v851 = vmul.f32 %v848, %v850
    %v852 = vadd.f32 %v848, %v851
    %vm853 = vweird.f32 %v847
    %vm854 = vweird.f32 %v848
    %vm855 = vmor %vm853, %vm854
    %v856 = vsel %vm855, %v848, %v852
    %v857 = vand.u32 2147483647, %v847
    %vm858 = vcmp.eq.f32.partialorder %v857, 8.507059e+37
    %v859 = vand.u32 %v847, 2147483648
    %v860 = vor.u32 1.1754944e-38, %v859
    %v861 = vsel %vm858, %v860, %v856
    %v862 = vmul.f32 1.0, %v861
    %v863 = vadd.f32 %v840, %v795
    %865 = vrot.lane.b32.xlu0 %v863, 64
    %v866 = vpop.permute.xlu0 %865
    %v868 = vmul.f32 %v862, %v866
    %870 = vrot.lane.b32.xlu0 %v868, 64
    %v871 = vpop.permute.xlu0 %870
    %v873 = vadd.f32 %v842, %v871
    %v874 = vtanh.pop %v873
    %v875 = vsub.f32 %v816, %v874
    %877 = vrot.lane.b32.xlu0 %v875, 96
    %v878 = vpop.permute.xlu0 %877
    %v880 = vmul.f32 %v862, %v878
    %882 = vrot.lane.b32.xlu0 %v880, 32
    %v883 = vpop.permute.xlu0 %882
    %v885 = vadd.f32 %v874, %v883
    %887 = vrot.lane.b32.xlu0 %v885, 64
    %v888 = vpop.permute.xlu0 %887
    %v889 = vsel %vm185, %v888, 0
    %891 = vmatpush.msra.mxu0 0.0
    %892 = vmatpush.msra.mxu0 0.0
    %893 = vmatpush.msra.mxu0 0.0
    %894 = vmatpush.msra.mxu0 0.0
    %895 = vmatpush.msra.mxu0 0.0
    %896 = vmatpush.msra.mxu0 0.0
    %897 = vmatpush.msra.mxu0 0.0
    %898 = vmatpush.msra.mxu0 0.0
    %899 = vmatpush.msra.mxu0 0.0
    %900 = vmatpush.msra.mxu0 0.0
    %901 = vmatpush.msra.mxu0 0.0
    %902 = vmatpush.msra.mxu0 0.0
    %903 = vmatpush.msra.mxu0 %v774
    %904 = vmatpush.msra.mxu0 %v773
    %905 = vmatpush.msra.mxu0 %v772
    %906 = vmatpush.msra.mxu0 %v771
    %907 = vmatmul.f32.gmra.mxu0 %v889
    %v908 = vpop.f32.mrf.mxu0
    %v909 = vadd.f32 0.0, %v908
    %910 = vdwg.mxu0
    %v911 = vld [vmem:[#allocation2 + $0x10] sm:$0xff]
    %v912 = vadd.f32 %v911, %v909
    %v913 = vxor.u32 %v912, 2147483648
    %v914 = vmul.f32 %v913, 1.442695
    %v915 = vpow.pop %v914
    %v916 = vadd.f32 %v915, 1.0
    %v917 = vrcp.pop %v916
    %v918 = vmul.f32 %v916, %v917
    %v919 = vsub.f32 1.0, %v918
    %v920 = vmul.f32 %v917, %v919
    %v921 = vadd.f32 %v917, %v920
    %vm922 = vweird.f32 %v916
    %vm923 = vweird.f32 %v917
    %vm924 = vmor %vm922, %vm923
    %v925 = vsel %vm924, %v917, %v921
    %v926 = vand.u32 2147483647, %v916
    %vm927 = vcmp.eq.f32.partialorder %v926, 8.507059e+37
    %v928 = vand.u32 %v916, 2147483648
    %v929 = vor.u32 1.1754944e-38, %v928
    %v930 = vsel %vm927, %v929, %v925
    %v931 = vmul.f32 1.0, %v930
    %v932 = vadd.f32 %v909, %v795
    %934 = vrot.lane.b32.xlu0 %v932, 64
    %v935 = vpop.permute.xlu0 %934
    %v937 = vmul.f32 %v931, %v935
    %939 = vrot.lane.b32.xlu0 %v937, 64
    %v940 = vpop.permute.xlu0 %939
    %v942 = vadd.f32 %v911, %v940
    %v943 = vtanh.pop %v942
    %v944 = vsub.f32 %v885, %v943
    %946 = vrot.lane.b32.xlu0 %v944, 96
    %v947 = vpop.permute.xlu0 %946
    %v949 = vmul.f32 %v931, %v947
    %951 = vrot.lane.b32.xlu0 %v949, 32
    %v952 = vpop.permute.xlu0 %951
    %v954 = vadd.f32 %v943, %v952
    %956 = vrot.lane.b32.xlu0 %v954, 64
    %v957 = vpop.permute.xlu0 %956
    %v958 = vsel %vm185, %v957, 0
    %960 = vmatpush.msra.mxu0 0.0
    %961 = vmatpush.msra.mxu0 0.0
    %962 = vmatpush.msra.mxu0 0.0
    %963 = vmatpush.msra.mxu0 0.0
    %964 = vmatpush.msra.mxu0 0.0
    %965 = vmatpush.msra.mxu0 0.0
    %966 = vmatpush.msra.mxu0 0.0
    %967 = vmatpush.msra.mxu0 0.0
    %968 = vmatpush.msra.mxu0 0.0
    %969 = vmatpush.msra.mxu0 0.0
    %970 = vmatpush.msra.mxu0 0.0
    %971 = vmatpush.msra.mxu0 0.0
    %972 = vmatpush.msra.mxu0 %v774
    %973 = vmatpush.msra.mxu0 %v773
    %974 = vmatpush.msra.mxu0 %v772
    %975 = vmatpush.msra.mxu0 %v771
    %976 = vmatmul.f32.gmra.mxu0 %v958
    %v977 = vpop.f32.mrf.mxu0
    %v978 = vadd.f32 0.0, %v977
    %979 = vdwg.mxu0
    %v980 = vld [vmem:[#allocation2 + $0x18] sm:$0xff]
    %v981 = vadd.f32 %v980, %v978
    %v982 = vxor.u32 %v981, 2147483648
    %v983 = vmul.f32 %v982, 1.442695
    %v984 = vpow.pop %v983
    %v985 = vadd.f32 %v984, 1.0
    %v986 = vrcp.pop %v985
    %v987 = vmul.f32 %v985, %v986
    %v988 = vsub.f32 1.0, %v987
    %v989 = vmul.f32 %v986, %v988
    %v990 = vadd.f32 %v986, %v989
    %vm991 = vweird.f32 %v985
    %vm992 = vweird.f32 %v986
    %vm993 = vmor %vm991, %vm992
    %v994 = vsel %vm993, %v986, %v990
    %v995 = vand.u32 2147483647, %v985
    %vm996 = vcmp.eq.f32.partialorder %v995, 8.507059e+37
    %v997 = vand.u32 %v985, 2147483648
    %v998 = vor.u32 1.1754944e-38, %v997
    %v999 = vsel %vm996, %v998, %v994
    %v1000 = vmul.f32 1.0, %v999
    %v1001 = vadd.f32 %v978, %v795
    %1003 = vrot.lane.b32.xlu0 %v1001, 64
    %v1004 = vpop.permute.xlu0 %1003
    %v1006 = vmul.f32 %v1000, %v1004
    %1008 = vrot.lane.b32.xlu0 %v1006, 64
    %v1009 = vpop.permute.xlu0 %1008
    %v1011 = vadd.f32 %v980, %v1009
    %v1012 = vtanh.pop %v1011
    %v1013 = vsub.f32 %v954, %v1012
    %1015 = vrot.lane.b32.xlu0 %v1013, 96
    %v1016 = vpop.permute.xlu0 %1015
    %v1018 = vmul.f32 %v1000, %v1016
    %1020 = vrot.lane.b32.xlu0 %v1018, 32
    %v1021 = vpop.permute.xlu0 %1020
    %v1023 = vadd.f32 %v1012, %v1021
    %1025 = vrot.lane.b32.xlu0 %v1023, 64
    %v1026 = vpop.permute.xlu0 %1025
    %v1027 = vsel %vm185, %v1026, 0
    %1029 = vmatpush.msra.mxu0 0.0
    %1030 = vmatpush.msra.mxu0 0.0
    %1031 = vmatpush.msra.mxu0 0.0
    %1032 = vmatpush.msra.mxu0 0.0
    %1033 = vmatpush.msra.mxu0 0.0
    %1034 = vmatpush.msra.mxu0 0.0
    %1035 = vmatpush.msra.mxu0 0.0
    %1036 = vmatpush.msra.mxu0 0.0
    %1037 = vmatpush.msra.mxu0 0.0
    %1038 = vmatpush.msra.mxu0 0.0
    %1039 = vmatpush.msra.mxu0 0.0
    %1040 = vmatpush.msra.mxu0 0.0
    %1041 = vmatpush.msra.mxu0 %v774
    %1042 = vmatpush.msra.mxu0 %v773
    %1043 = vmatpush.msra.mxu0 %v772
    %1044 = vmatpush.msra.mxu0 %v771
    %1045 = vmatmul.f32.gmra.mxu0 %v1027
    %v1046 = vpop.f32.mrf.mxu0
    %v1047 = vadd.f32 0.0, %v1046
    %1048 = vdwg.mxu0
    %v1049 = vld [vmem:[#allocation2 + $0x20] sm:$0xff]
    %v1050 = vadd.f32 %v1049, %v1047
    %v1051 = vxor.u32 %v1050, 2147483648
    %v1052 = vmul.f32 %v1051, 1.442695
    %v1053 = vpow.pop %v1052
    %v1054 = vadd.f32 %v1053, 1.0
    %v1055 = vrcp.pop %v1054
    %v1056 = vmul.f32 %v1054, %v1055
    %v1057 = vsub.f32 1.0, %v1056
    %v1058 = vmul.f32 %v1055, %v1057
    %v1059 = vadd.f32 %v1055, %v1058
    %vm1060 = vweird.f32 %v1054
    %vm1061 = vweird.f32 %v1055
    %vm1062 = vmor %vm1060, %vm1061
    %v1063 = vsel %vm1062, %v1055, %v1059
    %v1064 = vand.u32 2147483647, %v1054
    %vm1065 = vcmp.eq.f32.partialorder %v1064, 8.507059e+37
    %v1066 = vand.u32 %v1054, 2147483648
    %v1067 = vor.u32 1.1754944e-38, %v1066
    %v1068 = vsel %vm1065, %v1067, %v1063
    %v1069 = vmul.f32 1.0, %v1068
    %v1070 = vadd.f32 %v1047, %v795
    %1072 = vrot.lane.b32.xlu0 %v1070, 64
    %v1073 = vpop.permute.xlu0 %1072
    %v1075 = vmul.f32 %v1069, %v1073
    %1077 = vrot.lane.b32.xlu0 %v1075, 64
    %v1078 = vpop.permute.xlu0 %1077
    %v1080 = vadd.f32 %v1049, %v1078
    %v1081 = vtanh.pop %v1080
    %v1082 = vsub.f32 %v1023, %v1081
    %1084 = vrot.lane.b32.xlu0 %v1082, 96
    %v1085 = vpop.permute.xlu0 %1084
    %v1087 = vmul.f32 %v1069, %v1085
    %1089 = vrot.lane.b32.xlu0 %v1087, 32
    %v1090 = vpop.permute.xlu0 %1089
    %v1092 = vadd.f32 %v1081, %v1090
    %1094 = vrot.lane.b32.xlu0 %v1092, 64
    %v1095 = vpop.permute.xlu0 %1094
    %v1096 = vsel %vm185, %v1095, 0
    %1098 = vmatpush.msra.mxu0 0.0
    %1099 = vmatpush.msra.mxu0 0.0
    %1100 = vmatpush.msra.mxu0 0.0
    %1101 = vmatpush.msra.mxu0 0.0
    %1102 = vmatpush.msra.mxu0 0.0
    %1103 = vmatpush.msra.mxu0 0.0
    %1104 = vmatpush.msra.mxu0 0.0
    %1105 = vmatpush.msra.mxu0 0.0
    %1106 = vmatpush.msra.mxu0 0.0
    %1107 = vmatpush.msra.mxu0 0.0
    %1108 = vmatpush.msra.mxu0 0.0
    %1109 = vmatpush.msra.mxu0 0.0
    %1110 = vmatpush.msra.mxu0 %v774
    %1111 = vmatpush.msra.mxu0 %v773
    %1112 = vmatpush.msra.mxu0 %v772
    %1113 = vmatpush.msra.mxu0 %v771
    %1114 = vmatmul.f32.gmra.mxu0 %v1096
    %v1115 = vpop.f32.mrf.mxu0
    %v1116 = vadd.f32 0.0, %v1115
    %1117 = vdwg.mxu0
    %v1118 = vld [vmem:[#allocation2 + $0x28] sm:$0xff]
    %v1119 = vadd.f32 %v1118, %v1116
    %v1120 = vxor.u32 %v1119, 2147483648
    %v1121 = vmul.f32 %v1120, 1.442695
    %v1122 = vpow.pop %v1121
    %v1123 = vadd.f32 %v1122, 1.0
    %v1124 = vrcp.pop %v1123
    %v1125 = vmul.f32 %v1123, %v1124
    %v1126 = vsub.f32 1.0, %v1125
    %v1127 = vmul.f32 %v1124, %v1126
    %v1128 = vadd.f32 %v1124, %v1127
    %vm1129 = vweird.f32 %v1123
    %vm1130 = vweird.f32 %v1124
    %vm1131 = vmor %vm1129, %vm1130
    %v1132 = vsel %vm1131, %v1124, %v1128
    %v1133 = vand.u32 2147483647, %v1123
    %vm1134 = vcmp.eq.f32.partialorder %v1133, 8.507059e+37
    %v1135 = vand.u32 %v1123, 2147483648
    %v1136 = vor.u32 1.1754944e-38, %v1135
    %v1137 = vsel %vm1134, %v1136, %v1132
    %v1138 = vmul.f32 1.0, %v1137
    %v1139 = vadd.f32 %v1116, %v795
    %1141 = vrot.lane.b32.xlu0 %v1139, 64
    %v1142 = vpop.permute.xlu0 %1141
    %v1144 = vmul.f32 %v1138, %v1142
    %1146 = vrot.lane.b32.xlu0 %v1144, 64
    %v1147 = vpop.permute.xlu0 %1146
    %v1149 = vadd.f32 %v1118, %v1147
    %v1150 = vtanh.pop %v1149
    %v1151 = vsub.f32 %v1092, %v1150
    %1153 = vrot.lane.b32.xlu0 %v1151, 96
    %v1154 = vpop.permute.xlu0 %1153
    %v1156 = vmul.f32 %v1138, %v1154
    %1158 = vrot.lane.b32.xlu0 %v1156, 32
    %v1159 = vpop.permute.xlu0 %1158
    %v1161 = vadd.f32 %v1150, %v1159
    %1163 = vrot.lane.b32.xlu0 %v1161, 64
    %v1164 = vpop.permute.xlu0 %1163
    %v1165 = vsel %vm185, %v1164, 0
    %1167 = vmatpush.msra.mxu0 0.0
    %1168 = vmatpush.msra.mxu0 0.0
    %1169 = vmatpush.msra.mxu0 0.0
    %1170 = vmatpush.msra.mxu0 0.0
    %1171 = vmatpush.msra.mxu0 0.0
    %1172 = vmatpush.msra.mxu0 0.0
    %1173 = vmatpush.msra.mxu0 0.0
    %1174 = vmatpush.msra.mxu0 0.0
    %1175 = vmatpush.msra.mxu0 0.0
    %1176 = vmatpush.msra.mxu0 0.0
    %1177 = vmatpush.msra.mxu0 0.0
    %1178 = vmatpush.msra.mxu0 0.0
    %1179 = vmatpush.msra.mxu0 %v774
    %1180 = vmatpush.msra.mxu0 %v773
    %1181 = vmatpush.msra.mxu0 %v772
    %1182 = vmatpush.msra.mxu0 %v771
    %1183 = vmatmul.f32.gmra.mxu0 %v1165
    %v1184 = vpop.f32.mrf.mxu0
    %v1185 = vadd.f32 0.0, %v1184
    %1186 = vdwg.mxu0
    %v1187 = vld [vmem:[#allocation2 + $0x30] sm:$0xff]
    %v1188 = vadd.f32 %v1187, %v1185
    %v1189 = vxor.u32 %v1188, 2147483648
    %v1190 = vmul.f32 %v1189, 1.442695
    %v1191 = vpow.pop %v1190
    %v1192 = vadd.f32 %v1191, 1.0
    %v1193 = vrcp.pop %v1192
    %v1194 = vmul.f32 %v1192, %v1193
    %v1195 = vsub.f32 1.0, %v1194
    %v1196 = vmul.f32 %v1193, %v1195
    %v1197 = vadd.f32 %v1193, %v1196
    %vm1198 = vweird.f32 %v1192
    %vm1199 = vweird.f32 %v1193
    %vm1200 = vmor %vm1198, %vm1199
    %v1201 = vsel %vm1200, %v1193, %v1197
    %v1202 = vand.u32 2147483647, %v1192
    %vm1203 = vcmp.eq.f32.partialorder %v1202, 8.507059e+37
    %v1204 = vand.u32 %v1192, 2147483648
    %v1205 = vor.u32 1.1754944e-38, %v1204
    %v1206 = vsel %vm1203, %v1205, %v1201
    %v1207 = vmul.f32 1.0, %v1206
    %v1208 = vadd.f32 %v1185, %v795
    %1210 = vrot.lane.b32.xlu0 %v1208, 64
    %v1211 = vpop.permute.xlu0 %1210
    %v1213 = vmul.f32 %v1207, %v1211
    %1215 = vrot.lane.b32.xlu0 %v1213, 64
    %v1216 = vpop.permute.xlu0 %1215
    %v1218 = vadd.f32 %v1187, %v1216
    %v1219 = vtanh.pop %v1218
    %v1220 = vsub.f32 %v1161, %v1219
    %1222 = vrot.lane.b32.xlu0 %v1220, 96
    %v1223 = vpop.permute.xlu0 %1222
    %v1225 = vmul.f32 %v1207, %v1223
    %1227 = vrot.lane.b32.xlu0 %v1225, 32
    %v1228 = vpop.permute.xlu0 %1227
    %v1230 = vadd.f32 %v1219, %v1228
    %1232 = vrot.lane.b32.xlu0 %v1230, 64
    %v1233 = vpop.permute.xlu0 %1232
    %v1234 = vsel %vm185, %v1233, 0
    %1236 = vmatpush.msra.mxu0 0.0
    %1237 = vmatpush.msra.mxu0 0.0
    %1238 = vmatpush.msra.mxu0 0.0
    %1239 = vmatpush.msra.mxu0 0.0
    %1240 = vmatpush.msra.mxu0 0.0
    %1241 = vmatpush.msra.mxu0 0.0
    %1242 = vmatpush.msra.mxu0 0.0
    %1243 = vmatpush.msra.mxu0 0.0
    %1244 = vmatpush.msra.mxu0 0.0
    %1245 = vmatpush.msra.mxu0 0.0
    %1246 = vmatpush.msra.mxu0 0.0
    %1247 = vmatpush.msra.mxu0 0.0
    %1248 = vmatpush.msra.mxu0 %v774
    %1249 = vmatpush.msra.mxu0 %v773
    %1250 = vmatpush.msra.mxu0 %v772
    %1251 = vmatpush.msra.mxu0 %v771
    %1252 = vmatmul.f32.gmra.mxu0 %v1234
    %v1253 = vpop.f32.mrf.mxu0
    %v1254 = vadd.f32 0.0, %v1253
    %1255 = vdwg.mxu0
    %v1256 = vld [vmem:[#allocation2 + $0x38] sm:$0xff]
    %v1257 = vadd.f32 %v1256, %v1254
    %v1258 = vxor.u32 %v1257, 2147483648
    %v1259 = vmul.f32 %v1258, 1.442695
    %v1260 = vpow.pop %v1259
    %v1261 = vadd.f32 %v1260, 1.0
    %v1262 = vrcp.pop %v1261
    %v1263 = vmul.f32 %v1261, %v1262
    %v1264 = vsub.f32 1.0, %v1263
    %v1265 = vmul.f32 %v1262, %v1264
    %v1266 = vadd.f32 %v1262, %v1265
    %vm1267 = vweird.f32 %v1261
    %vm1268 = vweird.f32 %v1262
    %vm1269 = vmor %vm1267, %vm1268
    %v1270 = vsel %vm1269, %v1262, %v1266
    %v1271 = vand.u32 2147483647, %v1261
    %vm1272 = vcmp.eq.f32.partialorder %v1271, 8.507059e+37
    %v1273 = vand.u32 %v1261, 2147483648
    %v1274 = vor.u32 1.1754944e-38, %v1273
    %v1275 = vsel %vm1272, %v1274, %v1270
    %v1276 = vmul.f32 1.0, %v1275
    %v1277 = vadd.f32 %v1254, %v795
    %1279 = vrot.lane.b32.xlu0 %v1277, 64
    %v1280 = vpop.permute.xlu0 %1279
    %v1282 = vmul.f32 %v1276, %v1280
    %1284 = vrot.lane.b32.xlu0 %v1282, 64
    %v1285 = vpop.permute.xlu0 %1284
    %v1287 = vadd.f32 %v1256, %v1285
    %v1288 = vtanh.pop %v1287
    %v1289 = vsub.f32 %v1230, %v1288
    %1291 = vrot.lane.b32.xlu0 %v1289, 96
    %v1292 = vpop.permute.xlu0 %1291
    %v1294 = vmul.f32 %v1276, %v1292
    %1296 = vrot.lane.b32.xlu0 %v1294, 32
    %v1297 = vpop.permute.xlu0 %1296
    %v1299 = vadd.f32 %v1288, %v1297
    %v1300 = vld [vmem:[%s7] sm:$0xff]
    %v1301 = vld [vmem:[%s7 + $0x8] sm:$0xff]
    %v1302 = vld [vmem:[%s7 + $0x10] sm:$0xff]
    %v1303 = vld [vmem:[%s7 + $0x18] sm:$0xff]
    %v1304 = vld [vmem:[%s8] sm:$0x1]
    %v1306 = vperm.slane %v1304, 0
    %1309 = vrot.lane.b32.xlu0 %v1299, 64
    %v1310 = vpop.permute.xlu0 %1309
    %v1311 = vsel %vm185, %v1310, 0
    %1313 = vmatpush.msra.mxu0 0.0
    %1314 = vmatpush.msra.mxu0 0.0
    %1315 = vmatpush.msra.mxu0 0.0
    %1316 = vmatpush.msra.mxu0 0.0
    %1317 = vmatpush.msra.mxu0 0.0
    %1318 = vmatpush.msra.mxu0 0.0
    %1319 = vmatpush.msra.mxu0 0.0
    %1320 = vmatpush.msra.mxu0 0.0
    %1321 = vmatpush.msra.mxu0 0.0
    %1322 = vmatpush.msra.mxu0 0.0
    %1323 = vmatpush.msra.mxu0 0.0
    %1324 = vmatpush.msra.mxu0 0.0
    %1325 = vmatpush.msra.mxu0 %v1303
    %1326 = vmatpush.msra.mxu0 %v1302
    %1327 = vmatpush.msra.mxu0 %v1301
    %1328 = vmatpush.msra.mxu0 %v1300
    %1329 = vmatmul.f32.gmra.mxu0 %v1311
    %v1330 = vpop.f32.mrf.mxu0
    %v1331 = vadd.f32 %v1306, %v1330
    %1332 = vdwg.mxu0
    %vm1333 = vcmask 31744
    %1334 = vst.msk [vmem:[%s9] sm:$0xff] %vm1333, %v1331
    // Predicated region
    $region42: #{tpu_custom_call.1} parent=1 // pred_check
      _
    $region43: #{tpu_custom_call.1} parent=1 // pred_check_branch
      %1336 = sbr.rel (0) target = $region45
    $region44: #{tpu_custom_call.1} parent=1 // pred_region
      _
    $region45: #{tpu_custom_call.1} parent=1 // pred_fallthru
      _
    // Predicated region
    $region46: #{tpu_custom_call.1} parent=1 // pred_check
      _
    $region47: #{tpu_custom_call.1} parent=1 // pred_check_branch
      %1338 = sbr.rel (0) target = $region49
    $region48: #{tpu_custom_call.1} parent=1 // pred_region
      _
    $region49: #{tpu_custom_call.1} parent=1 // pred_fallthru
      _
    %1339 = vsyncpa [#allocation5], 1

</llo_original>
